<compile_context>
chip_gen: v6e
topology: v6e:2x2x1
jax: 0.10.0
libtpu: 0.0.40
codegen_flags: <defaults>
</compile_context>

<pallas_src>
import functools

import jax
import jax.numpy as jnp
from jax import lax
from jax.experimental import pallas as pl
from jax.experimental.pallas import tpu as pltpu


def _ceil_to(x, m):
    return ((x + m - 1) // m) * m


def _largest_divisor(n, candidates):
    for c in candidates:
        if n % c == 0:
            return c
    return n


# --------------------------------------------------------------------------
# Pallas kernel 1: tiled GEMM (bf16 operands, f32 accumulation)
#   variants: plain | +bias epilogue | +fused BN statistics epilogue
# --------------------------------------------------------------------------
def _gemm_kernel(a_ref, b_ref, o_ref, acc_ref):
    @pl.when(pl.program_id(2) == 0)
    def _():
        acc_ref[...] = jnp.zeros_like(acc_ref)

    acc_ref[...] += jnp.dot(a_ref[...], b_ref[...],
                            preferred_element_type=jnp.float32)

    @pl.when(pl.program_id(2) == pl.num_programs(2) - 1)
    def _():
        o_ref[...] = acc_ref[...].astype(o_ref.dtype)


def _gemm_bias_kernel(a_ref, b_ref, bias_ref, o_ref, acc_ref):
    @pl.when(pl.program_id(2) == 0)
    def _():
        acc_ref[...] = jnp.zeros_like(acc_ref)

    acc_ref[...] += jnp.dot(a_ref[...], b_ref[...],
                            preferred_element_type=jnp.float32)

    @pl.when(pl.program_id(2) == pl.num_programs(2) - 1)
    def _():
        o_ref[...] = (acc_ref[...] + bias_ref[...]).astype(o_ref.dtype)


def _gemm_stats_kernel(a_ref, b_ref, o_ref, sum_ref, sq_ref, acc_ref):
    # Last-K epilogue also emits per-M-tile column sum / sum-of-squares so the
    # BatchNorm statistics never require re-reading the activation from HBM.
    @pl.when(pl.program_id(2) == 0)
    def _():
        acc_ref[...] = jnp.zeros_like(acc_ref)

    acc_ref[...] += jnp.dot(a_ref[...], b_ref[...],
                            preferred_element_type=jnp.float32)

    @pl.when(pl.program_id(2) == pl.num_programs(2) - 1)
    def _():
        y = acc_ref[...]
        o_ref[...] = y.astype(o_ref.dtype)
        s = jnp.sum(y, axis=0, keepdims=True)
        q = jnp.sum(y * y, axis=0, keepdims=True)
        sum_ref[...] = s.reshape(sum_ref.shape)
        sq_ref[...] = q.reshape(sq_ref.shape)


def _pick_gemm_tiles(Mp, K, N):
    # N tile (lane dim)
    if N % 128 == 0:
        tn = 256 if N % 256 == 0 else 128
    else:
        tn = N                       # e.g. 64: full-N tile (small early layers)
    # M tile (sublane dim, bf16 packing -> multiples of 16, prefer >=128)
    tm = _largest_divisor(Mp, (256, 128, 64, 32, 16))
    # guarantee >= 2 parallel output tiles so dual-TensorCore chips split work
    if (Mp // tm) * (N // tn) < 2:
        if tn > 128 and N % 128 == 0:
            tn = 128
        elif tm >= 32:
            tm //= 2
    # K tile: single full-K step unless K is very deep (avoids accumulator revisits)
    if K % 128 != 0 or K <= 4608:
        tk = K
    else:
        tk = _largest_divisor(K, (2048, 1024, 512, 256, 128))
    return tm, tn, tk


@functools.lru_cache(maxsize=None)
def _gemm_fn(Mp, K, N, tm, tk, tn, out_dtype_name, has_bias, want_stats):
    out_dtype = jnp.dtype(out_dtype_name)
    m_tiles = Mp // tm
    in_specs = [pl.BlockSpec((tm, tk), lambda i, j, k: (i, k)),
                pl.BlockSpec((tk, tn), lambda i, j, k: (k, j))]
    if has_bias:
        kernel = _gemm_bias_kernel
        in_specs.append(pl.BlockSpec((1, tn), lambda i, j, k: (0, j)))
        out_shape = jax.ShapeDtypeStruct((Mp, N), out_dtype)
        out_specs = pl.BlockSpec((tm, tn), lambda i, j, k: (i, j))
    elif want_stats:
        kernel = _gemm_stats_kernel
        out_shape = (jax.ShapeDtypeStruct((Mp, N), out_dtype),
                     jax.ShapeDtypeStruct((m_tiles, 1, N), jnp.float32),
                     jax.ShapeDtypeStruct((m_tiles, 1, N), jnp.float32))
        out_specs = [pl.BlockSpec((tm, tn), lambda i, j, k: (i, j)),
                     pl.BlockSpec((1, 1, tn), lambda i, j, k: (i, 0, j)),
                     pl.BlockSpec((1, 1, tn), lambda i, j, k: (i, 0, j))]
    else:
        kernel = _gemm_kernel
        out_shape = jax.ShapeDtypeStruct((Mp, N), out_dtype)
        out_specs = pl.BlockSpec((tm, tn), lambda i, j, k: (i, j))

    # per-variant VMEM ask computed from actual tile bytes (never a blanket 48 MiB)
    vmem = (2 * tm * tk * 2           # A, double-buffered (bf16)
            + 2 * tk * tn * 2         # B, double-buffered (bf16)
            + 2 * tm * tn * 4         # output, double-buffered (upper bound f32)
            + tm * tn * 4             # f32 accumulator
            + 4 * 2 * tn * 4          # stats / bias vectors
            + (6 << 20))              # margin for compiler-internal scratch

    f = pl.pallas_call(
        kernel,
        out_shape=out_shape,
        grid_spec=pltpu.PrefetchScalarGridSpec(
            num_scalar_prefetch=0,
            grid=(m_tiles, N // tn, K // tk),
            in_specs=in_specs,
            out_specs=out_specs,
            scratch_shapes=[pltpu.VMEM((tm, tn), jnp.float32)]),
        compiler_params=pltpu.CompilerParams(
            dimension_semantics=("parallel", "parallel", "arbitrary"),
            vmem_limit_bytes=vmem),
    )
    return jax.jit(f)


def pallas_matmul(a, b, bias=None, want_stats=False, out_dtype=jnp.bfloat16):
    """(M,K) @ (K,N) on the MXU.  bf16 operands, f32 accumulation.
    want_stats -> also returns per-M-tile column sum / sum-of-squares (f32)."""
    assert not (want_stats and bias is not None)
    a = a.astype(jnp.bfloat16)
    b = b.astype(jnp.bfloat16)
    M, K = a.shape
    K2, N = b.shape
    assert K == K2
    Mp = _ceil_to(M, 16)                    # bf16 sublane packing is (16, 128)
    if Mp != M:                             # zero rows: harmless for y and stats
        a = jnp.pad(a, ((0, Mp - M), (0, 0)))
    Np = N
    if N % 128 != 0 and N < 64:             # lane-dense pad for tiny N (classifier)
        Np = 128
        b = jnp.pad(b, ((0, 0), (0, Np - N)))
        if bias is not None:
            bias = jnp.pad(bias, (0, Np - N))
    tm, tn, tk = _pick_gemm_tiles(Mp, K, Np)
    fn = _gemm_fn(Mp, K, Np, tm, tk, tn, jnp.dtype(out_dtype).name,
                  bias is not None, want_stats)
    if bias is not None:
        res = fn(a, b, bias.reshape(1, Np).astype(jnp.float32))
    else:
        res = fn(a, b)
    if want_stats:
        y, ssum, ssq = res
        if Np != N:
            y, ssum, ssq = y[:, :N], ssum[..., :N], ssq[..., :N]
        if Mp != M:
            y = y[:M]
        return y, ssum, ssq
    y = res
    if Np != N:
        y = y[:, :N]
    return y[:M] if Mp != M else y


def bn_finalize(ssum, ssq, rows, gamma, beta, eps=1e-5):
    """Per-channel (scale, shift) from GEMM-epilogue partial sums (tiny jnp op).
    Zero row-padding inside the GEMM contributes 0; we divide by the true rows."""
    s = jnp.sum(ssum, axis=(0, 1))
    q = jnp.sum(ssq, axis=(0, 1))
    mean = s / rows
    var = jnp.maximum(q / rows - mean * mean, 0.0)      # biased (batch) variance
    scale = gamma.astype(jnp.float32) * lax.rsqrt(var + eps)
    shift = beta.astype(jnp.float32) - mean * scale
    return scale.reshape(1, -1), shift.reshape(1, -1)


# --------------------------------------------------------------------------
# Pallas kernel 2: fused per-channel affine (+ residual / + shortcut-BN) + ReLU
#   tiled over (M, C); bf16 in / bf16 out, math in f32 (v5e has no bf16 VPU).
# --------------------------------------------------------------------------
def _make_affine_kernel(mode, relu):
    if mode == "plain":
        def kernel(y_ref, s_ref, b_ref, o_ref):
            v = y_ref[...].astype(jnp.float32) * s_ref[...] + b_ref[...]
            if relu:
                v = jnp.maximum(v, 0.0)
            o_ref[...] = v.astype(o_ref.dtype)
    elif mode == "res":                       # BN(main) + identity residual + ReLU
        def kernel(y_ref, s_ref, b_ref, r_ref, o_ref):
            v = (y_ref[...].astype(jnp.float32) * s_ref[...] + b_ref[...]
                 + r_ref[...].astype(jnp.float32))
            if relu:
                v = jnp.maximum(v, 0.0)
            o_ref[...] = v.astype(o_ref.dtype)
    else:                                     # "dual": BN(main) + BN(shortcut) + ReLU
        def kernel(y_ref, s_ref, b_ref, y2_ref, s2_ref, b2_ref, o_ref):
            v = (y_ref[...].astype(jnp.float32) * s_ref[...] + b_ref[...]
                 + y2_ref[...].astype(jnp.float32) * s2_ref[...] + b2_ref[...])
            if relu:
                v = jnp.maximum(v, 0.0)
            o_ref[...] = v.astype(o_ref.dtype)
    return kernel


@functools.lru_cache(maxsize=None)
def _affine_fn(Mp, C, tm, tc, mode, relu, out_dtype_name):
    kernel = _make_affine_kernel(mode, relu)
    slab = lambda: pl.BlockSpec((tm, tc), lambda i, j: (i, j))
    vec = lambda: pl.BlockSpec((1, tc), lambda i, j: (0, j))
    if mode == "plain":
        in_specs, n_slabs = [slab(), vec(), vec()], 1
    elif mode == "res":
        in_specs, n_slabs = [slab(), vec(), vec(), slab()], 2
    else:
        in_specs, n_slabs = [slab(), vec(), vec(), slab(), vec(), vec()], 2
    vmem = 2 * (n_slabs + 1) * tm * tc * 2 + 6 * tc * 4 + (4 << 20)
    f = pl.pallas_call(
        kernel,
        out_shape=jax.ShapeDtypeStruct((Mp, C), jnp.dtype(out_dtype_name)),
        grid=(Mp // tm, C // tc),
        in_specs=in_specs,
        out_specs=slab(),
        compiler_params=pltpu.CompilerParams(
            dimension_semantics=("parallel", "parallel"),
            vmem_limit_bytes=vmem),
    )
    return jax.jit(f)


def _elt_tiles(M, C):
    Mp = _ceil_to(M, 16)
    tm = _largest_divisor(Mp, (512, 256, 128, 64, 32, 16))
    tc = _largest_divisor(C, (512, 256, 128)) if C % 128 == 0 else C
    return Mp, tm, tc


def _pad_rows(y, Mp):
    M = y.shape[0]
    return y if Mp == M else jnp.pad(y, ((0, Mp - M), (0, 0)))


def apply_affine(y2d, scale, shift, relu=True, residual=None, dual=None,
                 out_dtype=jnp.bfloat16):
    """Fused y*scale+shift (+residual | +y2*scale2+shift2) (+ReLU), bf16 IO."""
    M, C = y2d.shape
    # Lane-densify C == 64: view two rows as one 128-wide row (free reshape),
    # duplicating the per-channel vectors -> full-lane unmasked vector stores.
    if C == 64 and M % 2 == 0:
        wide = lambda t: t.reshape(M // 2, 128)
        dual_w = None
        if dual is not None:
            y2, s2, b2 = dual
            dual_w = (wide(y2), jnp.tile(s2, (1, 2)), jnp.tile(b2, (1, 2)))
        out = apply_affine(wide(y2d), jnp.tile(scale, (1, 2)),
                           jnp.tile(shift, (1, 2)), relu=relu,
                           residual=None if residual is None else wide(residual),
                           dual=dual_w, out_dtype=out_dtype)
        return out.reshape(M, C)
    Mp, tm, tc = _elt_tiles(M, C)
    args = [_pad_rows(y2d, Mp), scale, shift]
    if dual is not None:
        mode = "dual"
        y2, s2, b2 = dual
        args += [_pad_rows(y2, Mp), s2, b2]
    elif residual is not None:
        mode = "res"
        args.append(_pad_rows(residual, Mp))
    else:
        mode = "plain"
    f = _affine_fn(Mp, C, tm, tc, mode, bool(relu), jnp.dtype(out_dtype).name)
    out = f(*args)
    return out[:M] if Mp != M else out


# --------------------------------------------------------------------------
# Conv wrapper: tap-pruned im2col glue (bf16) + Pallas GEMM (+ fused BN stats)
# --------------------------------------------------------------------------
def _tap_alive(k, size, out_size, stride, padding, dilation):
    lo = k * dilation - padding
    hi = (out_size - 1) * stride + k * dilation - padding
    return hi >= 0 and lo < size


def conv2d(x, w, stride=1, padding=0, dilation=1, bias=None, want_stats=False,
           out_dtype=jnp.bfloat16):
    # x: (N,H,W,Cin)  w: (KH,KW,Cin,Cout)
    x = x.astype(jnp.bfloat16)
    w = w.astype(jnp.bfloat16)
    N, H, W, Cin = x.shape
    KH, KW, _, Cout = w.shape
    Ho = (H + 2 * padding - dilation * (KH - 1) - 1) // stride + 1
    Wo = (W + 2 * padding - dilation * (KW - 1) - 1) // stride + 1
    # Prune taps whose receptive positions lie entirely in the zero padding
    # (static; e.g. ASPP dilation 6/12/18 on a 4x4 map keeps only the center tap).
    taps = [(kh, kw) for kh in range(KH) for kw in range(KW)
            if _tap_alive(kh, H, Ho, stride, padding, dilation)
            and _tap_alive(kw, W, Wo, stride, padding, dilation)]
    if KH == 1 and KW == 1 and padding == 0:
        xs = x if stride == 1 else x[:, ::stride, ::stride, :]
        a = xs.reshape(N * Ho * Wo, Cin)
        wm = w.reshape(Cin, Cout)
    elif (len(taps) == 1 and stride == 1
          and taps[0][0] * dilation == padding
          and taps[0][1] * dilation == padding
          and Ho == H and Wo == W):
        # Only the aligned center tap survives -> plain 1x1 conv, no im2col at all.
        a = x.reshape(N * Ho * Wo, Cin)
        wm = w[taps[0][0], taps[0][1]]
    else:
        # TODO(synk): stream im2col patches through the GEMM BlockSpec index_map
        # instead of materializing the expanded bf16 matrix in HBM.
        xp = jnp.pad(x, ((0, 0), (padding, padding), (padding, padding), (0, 0)))
        cols = []
        for kh, kw in taps:
            h0, w0 = kh * dilation, kw * dilation
            cols.append(xp[:, h0:h0 + (Ho - 1) * stride + 1:stride,
                             w0:w0 + (Wo - 1) * stride + 1:stride, :])
        a = jnp.concatenate(cols, axis=-1).reshape(N * Ho * Wo, len(taps) * Cin)
        if len(taps) == KH * KW:
            wm = w.reshape(KH * KW * Cin, Cout)
        else:
            wm = jnp.concatenate([w[kh, kw] for kh, kw in taps], axis=0)
    res = pallas_matmul(a, wm, bias=bias, want_stats=want_stats,
                        out_dtype=out_dtype)
    if want_stats:
        y, ssum, ssq = res
        return y.reshape(N, Ho, Wo, Cout), ssum, ssq
    return res.reshape(N, Ho, Wo, Cout)


def conv_bn_act(x, conv, bn, stride=1, padding=0, dilation=1, relu=True):
    # Conv bias (if present) is NOT applied: it feeds a batch-statistics
    # BatchNorm whose mean subtraction cancels it exactly.
    y4, ssum, ssq = conv2d(x, conv["w"], stride=stride, padding=padding,
                           dilation=dilation, want_stats=True)
    N, Ho, Wo, C = y4.shape
    scale, shift = bn_finalize(ssum, ssq, N * Ho * Wo, bn["g"], bn["b"])
    out = apply_affine(y4.reshape(N * Ho * Wo, C), scale, shift, relu=relu)
    return out.reshape(N, Ho, Wo, C)


def maxpool2d_3x3_s2(x):
    # 3x3 / stride 2 / pad 1 max-pool (plain-JAX glue; -inf pad == PyTorch)
    neg_inf = jnp.array(-jnp.inf, dtype=x.dtype)
    return lax.reduce_window(x, neg_inf, lax.max,
                             (1, 3, 3, 1), (1, 2, 2, 1),
                             ((0, 0), (1, 1), (1, 1), (0, 0)))


# --------------------------------------------------------------------------
# Deterministic parameter construction
# --------------------------------------------------------------------------
class ParamGen:
    def __init__(self, seed):
        self._key = jax.random.PRNGKey(seed)
        self._i = 0

    def normal(self, shape, scale):
        k = jax.random.fold_in(self._key, self._i)
        self._i += 1
        return scale * jax.random.normal(k, shape, dtype=jnp.float32)


def make_conv(gen, cin, cout, k, bias=False):
    p = {"w": gen.normal((k, k, cin, cout), float(k * k * cin) ** -0.5)}
    if bias:
        p["b"] = gen.normal((cout,), 0.01)
    return p


def make_bn(gen, c):
    return {"g": 1.0 + gen.normal((c,), 0.05), "b": gen.normal((c,), 0.05)}


def make_bottleneck(gen, cin, channels, stride):
    cout = 4 * channels
    p = {
        "conv1": make_conv(gen, cin, channels, 1),
        "bn1": make_bn(gen, channels),
        "conv2": make_conv(gen, channels, channels, 3),
        "bn2": make_bn(gen, channels),
        "conv3": make_conv(gen, channels, cout, 1),
        "bn3": make_bn(gen, cout),
    }
    if stride != 1 or cin != cout:
        p["down_conv"] = make_conv(gen, cin, cout, 1)
        p["down_bn"] = make_bn(gen, cout)
    return p


def make_layer(gen, cin, channels, num_blocks, stride):
    blocks = []
    s = stride
    for _ in range(num_blocks):
        blocks.append(make_bottleneck(gen, cin, channels, s))
        cin = 4 * channels
        s = 1
    return blocks


def make_deeplabv3(seed, num_classes):
    gen = ParamGen(seed)
    resnet = {
        "conv1": make_conv(gen, 3, 64, 7),
        "bn1": make_bn(gen, 64),
        "layer1": make_layer(gen, 64, 64, 3, stride=1),
        "layer2": make_layer(gen, 256, 128, 4, stride=2),
        "layer3": make_layer(gen, 512, 256, 6, stride=2),
        "layer5": make_layer(gen, 1024, 512, 3, stride=1),  # dilated stage (OS16)
    }
    aspp = {
        "conv_1x1_1": make_conv(gen, 2048, 256, 1, bias=True),
        "bn_1x1_1": make_bn(gen, 256),
        "conv_3x3_1": make_conv(gen, 2048, 256, 3, bias=True),
        "bn_3x3_1": make_bn(gen, 256),
        "conv_3x3_2": make_conv(gen, 2048, 256, 3, bias=True),
        "bn_3x3_2": make_bn(gen, 256),
        "conv_3x3_3": make_conv(gen, 2048, 256, 3, bias=True),
        "bn_3x3_3": make_bn(gen, 256),
        "conv_1x1_2": make_conv(gen, 2048, 256, 1, bias=True),
        "bn_1x1_2": make_bn(gen, 256),
        "conv_1x1_3": make_conv(gen, 1280, 256, 1, bias=True),
        "bn_1x1_3": make_bn(gen, 256),
        "conv_1x1_4": make_conv(gen, 256, num_classes, 1, bias=True),
    }
    return {"resnet": resnet, "aspp": aspp}


def prepare_params(p):
    """One-time cast of conv weights to bf16 (outside jit) so f32 weights are
    never streamed from HBM during the forward pass.  BN params / biases stay f32."""
    if isinstance(p, dict):
        return {k: (v.astype(jnp.bfloat16) if k == "w" else prepare_params(v))
                for k, v in p.items()}
    if isinstance(p, list):
        return [prepare_params(v) for v in p]
    return p


# --------------------------------------------------------------------------
# Forward pass
# --------------------------------------------------------------------------
def bottleneck_forward(p, x, stride, dilation):
    out = conv_bn_act(x, p["conv1"], p["bn1"])
    out = conv_bn_act(out, p["conv2"], p["bn2"], stride=stride,
                      padding=dilation, dilation=dilation)
    y3, s3sum, s3sq = conv2d(out, p["conv3"]["w"], want_stats=True)
    N, H, W, C = y3.shape
    M = N * H * W
    s3, b3 = bn_finalize(s3sum, s3sq, M, p["bn3"]["g"], p["bn3"]["b"])
    y3_2 = y3.reshape(M, C)
    if "down_conv" in p:
        yd, dsum, dsq = conv2d(x, p["down_conv"]["w"], stride=stride,
                               want_stats=True)
        sd, bd = bn_finalize(dsum, dsq, M, p["down_bn"]["g"], p["down_bn"]["b"])
        # fused: BN(main) + BN(shortcut) + add + ReLU in one elementwise pass
        res = apply_affine(y3_2, s3, b3, relu=True,
                           dual=(yd.reshape(M, C), sd, bd))
    else:
        # fused: BN(main) + identity residual + ReLU
        res = apply_affine(y3_2, s3, b3, relu=True,
                           residual=x.reshape(M, C))
    return res.reshape(N, H, W, C)


# (layer name, first-block stride, dilation) -- static architecture config
_LAYER_CFG = (("layer1", 1, 1), ("layer2", 2, 1), ("layer3", 2, 1),
              ("layer5", 1, 2))


def resnet_forward(p, x):
    out = conv_bn_act(x, p["conv1"], p["bn1"], stride=2, padding=3)
    out = maxpool2d_3x3_s2(out)
    for name, stride, dilation in _LAYER_CFG:
        for bi, blk in enumerate(p[name]):
            out = bottleneck_forward(blk, out, stride if bi == 0 else 1, dilation)
    return out  # (N, H/16, W/16, 2048)


def _prunes_to_center(size, padding, dilation):
    """True if a dilated 3x3 stride-1 conv keeps only its aligned center tap."""
    return padding == dilation and dilation >= size


def aspp_forward(p, fm):
    N, H, W, C = fm.shape
    M = N * H * W
    fm2 = fm.reshape(M, C)
    num_classes = p["conv_1x1_4"]["w"].shape[-1]

    merged = all(_prunes_to_center(s, d, d) for d in (6, 12, 18) for s in (H, W))
    if merged:
        # All dilated 3x3 branches reduce to their aligned center tap, so the
        # four fm-consuming ASPP branches collapse into ONE (2048 -> 1024) GEMM
        # with one fused-stats BN and one affine pass over the concatenated
        # channels (per-channel BN == per-branch BN).
        w_cat = jnp.concatenate(
            [p["conv_1x1_1"]["w"].reshape(C, -1),
             p["conv_3x3_1"]["w"][1, 1],
             p["conv_3x3_2"]["w"][1, 1],
             p["conv_3x3_3"]["w"][1, 1]], axis=1)
        g_cat = jnp.concatenate([p["bn_1x1_1"]["g"], p["bn_3x3_1"]["g"],
                                 p["bn_3x3_2"]["g"], p["bn_3x3_3"]["g"]])
        b_cat = jnp.concatenate([p["bn_1x1_1"]["b"], p["bn_3x3_1"]["b"],
                                 p["bn_3x3_2"]["b"], p["bn_3x3_3"]["b"]])
        y, ssum, ssq = pallas_matmul(fm2, w_cat, want_stats=True)
        scale, shift = bn_finalize(ssum, ssq, M, g_cat, b_cat)
        main = apply_affine(y, scale, shift, relu=True)           # (M, 1024)
    else:
        branches = [
            conv_bn_act(fm, p["conv_1x1_1"], p["bn_1x1_1"]),
            conv_bn_act(fm, p["conv_3x3_1"], p["bn_3x3_1"], padding=6, dilation=6),
            conv_bn_act(fm, p["conv_3x3_2"], p["bn_3x3_2"], padding=12, dilation=12),
            conv_bn_act(fm, p["conv_3x3_3"], p["bn_3x3_3"], padding=18, dilation=18),
        ]
        main = jnp.concatenate([b.reshape(M, -1) for b in branches], axis=-1)

    # image-level branch: AdaptiveAvgPool2d(1) -> 1x1 conv -> BN -> ReLU;
    # bilinear upsample from a 1x1 source == broadcast.
    pooled = jnp.mean(fm.astype(jnp.float32), axis=(1, 2))        # (N, 2048)
    yp, psum, psq = pallas_matmul(pooled, p["conv_1x1_2"]["w"].reshape(C, -1),
                                  want_stats=True)
    sp, bp = bn_finalize(psum, psq, N, p["bn_1x1_2"]["g"], p["bn_1x1_2"]["b"])
    pooled_out = apply_affine(yp, sp, bp, relu=True)              # (N, 256)
    img = jnp.broadcast_to(pooled_out[:, None, None, :],
                           (N, H, W, pooled_out.shape[-1])).reshape(M, -1)

    cat = jnp.concatenate([main, img], axis=-1)                   # (M, 1280)
    y3, c3sum, c3sq = pallas_matmul(
        cat, p["conv_1x1_3"]["w"].reshape(cat.shape[1], -1), want_stats=True)
    sc3, sh3 = bn_finalize(c3sum, c3sq, M, p["bn_1x1_3"]["g"], p["bn_1x1_3"]["b"])
    h = apply_affine(y3, sc3, sh3, relu=True)                     # (M, 256)

    logits = pallas_matmul(h, p["conv_1x1_4"]["w"].reshape(h.shape[1], num_classes),
                           bias=p["conv_1x1_4"]["b"], out_dtype=jnp.float32)
    return logits.reshape(N, H, W, num_classes)                   # f32


def deeplabv3_forward(params, x_nchw):
    x = jnp.transpose(x_nchw, (0, 2, 3, 1)).astype(jnp.bfloat16)  # NCHW -> NHWC
    fm = resnet_forward(params["resnet"], x)
    out = aspp_forward(params["aspp"], fm)
    num_classes = out.shape[-1]
    out_nchw = jnp.transpose(out, (0, 3, 1, 2))                   # back to PyTorch NCHW
    return out_nchw.reshape(-1, num_classes)                      # == output.view(-1, num_classes)


# --------------------------------------------------------------------------
if __name__ == "__main__":
    num_classes = 10
    N, C, H, W = 2, 3, 64, 64   # OS16 -> 4x4 feature map

    params = prepare_params(make_deeplabv3(seed=0, num_classes=num_classes))
    x = jax.random.normal(jax.random.PRNGKey(0), (N, C, H, W), dtype=jnp.float32)

    fwd = jax.jit(deeplabv3_forward)
    out = jax.block_until_ready(fwd(params, x))

    assert out.shape == (N * (H // 16) * (W // 16), num_classes), out.shape
    assert bool(jnp.all(jnp.isfinite(out)))
    print("KERNEL_OK")
</pallas_src>

<mosaic_0001>
module attributes {stable_mosaic.version = 11 : i64} {
  func.func @_gemm_stats_kernel(%arg0: i32, %arg1: i32, %arg2: i32, %arg3: memref<256x147xbf16, #tpu.memory_space<vmem>>, %arg4: memref<147x64xbf16, #tpu.memory_space<vmem>>, %arg5: memref<256x64xbf16, #tpu.memory_space<vmem>>, %arg6: memref<1x1x64xf32, #tpu.memory_space<vmem>>, %arg7: memref<1x1x64xf32, #tpu.memory_space<vmem>>, %arg8: memref<256x64xf32, #tpu.memory_space<vmem>>) attributes {dimension_semantics = [#tpu.dimension_semantics<parallel>, #tpu.dimension_semantics<parallel>, #tpu.dimension_semantics<arbitrary>], iteration_bounds = array<i64: 8, 1, 1>, scalar_prefetch = 0 : i64, scratch_operands = 1 : i64, tpu.core_type = #tpu.core_type<tc>, window_params = [{transform_indices = @transform_0, window_bounds = array<i64: 256, 147>}, {transform_indices = @transform_1, window_bounds = array<i64: 147, 64>}, {transform_indices = @transform_2, window_bounds = array<i64: 256, 64>}, {transform_indices = @transform_3, window_bounds = array<i64: 1, 1, 64>}, {transform_indices = @transform_4, window_bounds = array<i64: 1, 1, 64>}]} {
    %c0_i32 = arith.constant 0 : i32
    %0 = arith.cmpi eq, %arg2, %c0_i32 : i32
    %1 = arith.extui %0 : i1 to i32
    %c0_i32_0 = arith.constant 0 : i32
    %2 = arith.cmpi ne, %1, %c0_i32_0 : i32
    scf.if %2 {
      %cst_10 = arith.constant 0.000000e+00 : f32
      %12 = vector.broadcast %cst_10 : f32 to vector<256x64xf32>
      %c0_11 = arith.constant 0 : index
      %c0_12 = arith.constant 0 : index
      %13 = vector.load %arg8[%c0_11, %c0_12] : memref<256x64xf32, #tpu.memory_space<vmem>>, vector<256x64xf32>
      tpu.vector_store %arg8[%c0_11, %c0_12], %12 {strides = array<i32>} : memref<256x64xf32, #tpu.memory_space<vmem>>, vector<256x64xf32>,
    } else {
    }
    %c0 = arith.constant 0 : index
    %c0_1 = arith.constant 0 : index
    %3 = vector.load %arg8[%c0, %c0_1] : memref<256x64xf32, #tpu.memory_space<vmem>>, vector<256x64xf32>
    %c0_2 = arith.constant 0 : index
    %c0_3 = arith.constant 0 : index
    %4 = vector.load %arg3[%c0_2, %c0_3] : memref<256x147xbf16, #tpu.memory_space<vmem>>, vector<256x147xbf16>
    %c0_4 = arith.constant 0 : index
    %c0_5 = arith.constant 0 : index
    %5 = vector.load %arg4[%c0_4, %c0_5] : memref<147x64xbf16, #tpu.memory_space<vmem>>, vector<147x64xbf16>
    %cst = arith.constant dense<0.000000e+00> : vector<256x64xf32>
    %6 = tpu.matmul %4, %5, %cst {dimension_numbers = #tpu.dot_dimension_numbers<[1], [0], [0], [1], [0, 0, 1, 1], [], []>} : vector<256x147xbf16>, vector<147x64xbf16>, vector<256x64xf32> -> vector<256x64xf32>
    %7 = arith.addf %3, %6 : vector<256x64xf32>
    %c0_6 = arith.constant 0 : index
    %c0_7 = arith.constant 0 : index
    %8 = vector.load %arg8[%c0_6, %c0_7] : memref<256x64xf32, #tpu.memory_space<vmem>>, vector<256x64xf32>
    tpu.vector_store %arg8[%c0_6, %c0_7], %7 {strides = array<i32>} : memref<256x64xf32, #tpu.memory_space<vmem>>, vector<256x64xf32>,
    %c0_i32_8 = arith.constant 0 : i32
    %9 = arith.cmpi eq, %arg2, %c0_i32_8 : i32
    %10 = arith.extui %9 : i1 to i32
    %c0_i32_9 = arith.constant 0 : i32
    %11 = arith.cmpi ne, %10, %c0_i32_9 : i32
    scf.if %11 {
      %c0_10 = arith.constant 0 : index
      %c0_11 = arith.constant 0 : index
      %12 = vector.load %arg8[%c0_10, %c0_11] : memref<256x64xf32, #tpu.memory_space<vmem>>, vector<256x64xf32>
      %13 = arith.truncf %12 : vector<256x64xf32> to vector<256x64xbf16>
      %c0_12 = arith.constant 0 : index
      %c0_13 = arith.constant 0 : index
      %14 = vector.load %arg5[%c0_12, %c0_13] : memref<256x64xbf16, #tpu.memory_space<vmem>>, vector<256x64xbf16>
      tpu.vector_store %arg5[%c0_12, %c0_13], %13 {strides = array<i32>} : memref<256x64xbf16, #tpu.memory_space<vmem>>, vector<256x64xbf16>,
      %cst_14 = arith.constant dense<0.000000e+00> : vector<64xf32>
      %15 = vector.multi_reduction <add>, %12, %cst_14 [0] : vector<256x64xf32> to vector<64xf32>
      %16 = vector.shape_cast %15 : vector<64xf32> to vector<1x64xf32>
      %17 = arith.mulf %12, %12 : vector<256x64xf32>
      %cst_15 = arith.constant dense<0.000000e+00> : vector<64xf32>
      %18 = vector.multi_reduction <add>, %17, %cst_15 [0] : vector<256x64xf32> to vector<64xf32>
      %19 = vector.shape_cast %18 : vector<64xf32> to vector<1x64xf32>
      %20 = vector.shape_cast %16 : vector<1x64xf32> to vector<1x1x64xf32>
      %c0_16 = arith.constant 0 : index
      %c0_17 = arith.constant 0 : index
      %c0_18 = arith.constant 0 : index
      %21 = vector.load %arg6[%c0_16, %c0_17, %c0_18] : memref<1x1x64xf32, #tpu.memory_space<vmem>>, vector<1x1x64xf32>
      tpu.vector_store %arg6[%c0_16, %c0_17, %c0_18], %20 {strides = array<i32>} : memref<1x1x64xf32, #tpu.memory_space<vmem>>, vector<1x1x64xf32>,
      %22 = vector.shape_cast %19 : vector<1x64xf32> to vector<1x1x64xf32>
      %c0_19 = arith.constant 0 : index
      %c0_20 = arith.constant 0 : index
      %c0_21 = arith.constant 0 : index
      %23 = vector.load %arg7[%c0_19, %c0_20, %c0_21] : memref<1x1x64xf32, #tpu.memory_space<vmem>>, vector<1x1x64xf32>
      tpu.vector_store %arg7[%c0_19, %c0_20, %c0_21], %22 {strides = array<i32>} : memref<1x1x64xf32, #tpu.memory_space<vmem>>, vector<1x1x64xf32>,
    } else {
    }
    return
  }
  func.func @transform_0(%arg0: i32, %arg1: i32, %arg2: i32) -> (i32, i32) {
    %c0_i32 = arith.constant 0 : i32
    return %arg0, %arg2 : i32, i32
  }
  func.func @transform_1(%arg0: i32, %arg1: i32, %arg2: i32) -> (i32, i32) {
    %c0_i32 = arith.constant 0 : i32
    return %arg2, %arg1 : i32, i32
  }
  func.func @transform_2(%arg0: i32, %arg1: i32, %arg2: i32) -> (i32, i32) {
    %c0_i32 = arith.constant 0 : i32
    return %arg0, %arg1 : i32, i32
  }
  func.func @transform_3(%arg0: i32, %arg1: i32, %arg2: i32) -> (i32, i32, i32) {
    %c0_i32 = arith.constant 0 : i32
    %c0_i32_0 = arith.constant 0 : i32
    return %arg0, %c0_i32, %arg1 : i32, i32, i32
  }
  func.func @transform_4(%arg0: i32, %arg1: i32, %arg2: i32) -> (i32, i32, i32) {
    %c0_i32 = arith.constant 0 : i32
    %c0_i32_0 = arith.constant 0 : i32
    return %arg0, %c0_i32, %arg1 : i32, i32, i32
  }
}

</mosaic_0001>

<llo_original>
// kernel: tpu_custom_call.1
$region0: #{tpu_custom_call.1}
  #allocation0 [shape = 'u32[]', space=smem, size = 0x4, offset = 0x4, fixed_abs, tag = 'smem constant byte address 0x4 - core index']
  #allocation1 [shape = 'u32[144,128]{1,0:T(1,128)}', space=vmem, size = 0x12000, scoped, tag = 'internal scratch']
  #allocation2 [shape = 'f32[256,64]{1,0:T(8,128)}', space=vmem, size = 0x20000, scoped, tag = 'scratch operand']
  %s0 = inlined_call_operand.vmem [shape: bf16[2048,147], index: 0, kind: input, shape index: {}]
  %s1 = inlined_call_operand.vmem [shape: bf16[147,64], index: 1, kind: input, shape index: {}]
  %s2 = inlined_call_operand.vmem [shape: bf16[2048,64], index: 2, kind: output, shape index: {0}]
  %s3 = inlined_call_operand.hbm [shape: f32[8,1,64], index: 3, kind: output, shape index: {1}]
  %s4 = inlined_call_operand.hbm [shape: f32[8,1,64], index: 4, kind: output, shape index: {2}]
  %5 = xla_tuple %s2, %s3, %s4
  %s6 = sld [smem:[#allocation0]]
  $region65: #{tpu_custom_call.1} parent=0
    _
  %s8 = ssub.s32 1, %s6
  %s9 = scalar_select 0, %s8, %s6
  $region1: #{tpu_custom_call.1} parent=0
    #allocation3 [shape = 'u8[1024]{0}', space=vmem, size = 0x400, scoped, tag = 'output window, operand 1']
    #allocation4 [shape = 's32[2]{0}', space=sflag, size = 0x8, scoped, tag = 'scoped memory for tpu_custom_call.1']
    #allocation5 [shape = 'u8[1024]{0}', space=vmem, size = 0x400, scoped, tag = 'output window, operand 2']
    #allocation6 [shape = 's32[2]{0}', space=sflag, size = 0x8, scoped, tag = 'scoped memory for tpu_custom_call.1']
    %10 = vsyncpa [#allocation4], 0
    %s11 = scalar_lea.sflag [#allocation4], 1
    %12 = vsyncpa %s11, 0
    %13 = vsyncpa [#allocation6], 0
    %s14 = scalar_lea.sflag [#allocation6], 1
    %15 = vsyncpa %s14, 0
    loop: start=0, step=1, limit=10
    $region2: #{tpu_custom_call.1} parent=1 // loop_pre_header
      _
    $region3: #{tpu_custom_call.1} parent=1 // loop_header
      %s17 = sphi 0, %s21
      %p18 = scmp.ge.s32.totalorder %s17, 10
      %s24 = sphi 0, %s43
      %s25 = sphi 0, %s39
      %s26 = sphi 0, %s35
      %s27 = sphi 0, %s24
      %s28 = sphi 0, %s25
      %s29 = sphi 0, %s26
      %s30 = sphi 0, %s27
      %s31 = sphi 0, %s28
      %s32 = sphi 0, %s29
      %s48 = sphi 0, %s50
      %s51 = sphi 0, %s48
      %s52 = sphi 0, %s51
      %s68 = sphi 0, %s52
      %s76 = sphi 0, %s78
      %s79 = sphi 0, %s76
      %s80 = sphi 0, %s79
      %s96 = sphi 0, %s80
      %s104 = sphi 0, %s106
      %s107 = sphi 0, %s104
      %s108 = sphi 0, %s107
      %s124 = sphi 0, %s108
      %s132 = sphi 0, %s134
      %s135 = sphi 0, %s132
      %s136 = sphi 0, %s135
      %s152 = sphi 0, %s136
      %s160 = sphi 0, %s162
      %s163 = sphi 0, %s160
      %s164 = sphi 0, %s163
      %s180 = sphi 0, %s164
    $region4: #{tpu_custom_call.1} parent=1 // loop_header_branch
      %20 = sbr.rel (%p18) target = $region8
    $region5: #{tpu_custom_call.1} parent=1 // loop_body
      %s22 = ssub.s32 %s17, 1
      %s23 = ssub.s32 %s17, 2
      %s33 = sadd.s32 1, %s26
      %p34 = scmp.ge.s32.totalorder %s33, 1
      %s35 = scalar_select %p34, 0, %s33
      %s36 = sadd.s32 1, %s25
      %s37 = scalar_select %p34, %s36, %s25
      %p38 = scmp.ge.s32.totalorder %s37, 1
      %s39 = scalar_select %p38, 0, %s37
      %s40 = sadd.s32 1, %s24
      %s41 = scalar_select %p38, %s40, %s24
      %p42 = scmp.ge.s32.totalorder %s41, 8
      %s43 = scalar_select %p42, 0, %s41
      %s44 = ssub.s32 %s24, %s43
      %s45 = ssub.s32 %s26, %s35
      %s46 = sor.u32 %s44, %s45
      %p47 = scmp.eq.s32.totalorder %s46, 0
      %s49 = sadd.s32 %s48, 1
      %s50 = scalar_select %p47, %s48, %s49
      %p53 = pneg %p47
      %p54 = scmp.eq.s32.totalorder %s17, 7
      %p55 = por %p53, %p54
      %p56 = scmp.ne.s32.totalorder %s48, %s51
      %p57 = scmp.eq.s32.totalorder %s17, 0
      %p58 = por %p56, %p57
      %p59 = scmp.ne.s32.totalorder %s48, %s51
      %p60 = scmp.eq.s32.totalorder %s22, 7
      %p61 = por %p59, %p60
      %p62 = scmp.ne.s32.totalorder %s51, %s52
      %p63 = scmp.eq.s32.totalorder %s22, 0
      %p64 = por %p62, %p63
      %p65 = scmp.ne.s32.totalorder %s51, %s52
      %p66 = scmp.eq.s32.totalorder %s23, 7
      %p67 = por %p65, %p66
      %p69 = scmp.ne.s32.totalorder %s52, %s68
      %p70 = scmp.eq.s32.totalorder %s23, 0
      %p71 = por %p69, %p70
      %s72 = ssub.s32 %s26, %s35
      %s73 = ssub.s32 %s25, %s39
      %s74 = sor.u32 %s72, %s73
      %p75 = scmp.eq.s32.totalorder %s74, 0
      %s77 = sadd.s32 %s76, 1
      %s78 = scalar_select %p75, %s76, %s77
      %p81 = pneg %p75
      %p82 = scmp.eq.s32.totalorder %s17, 7
      %p83 = por %p81, %p82
      %p84 = scmp.ne.s32.totalorder %s76, %s79
      %p85 = scmp.eq.s32.totalorder %s17, 0
      %p86 = por %p84, %p85
      %p87 = scmp.ne.s32.totalorder %s76, %s79
      %p88 = scmp.eq.s32.totalorder %s22, 7
      %p89 = por %p87, %p88
      %p90 = scmp.ne.s32.totalorder %s79, %s80
      %p91 = scmp.eq.s32.totalorder %s22, 0
      %p92 = por %p90, %p91
      %p93 = scmp.ne.s32.totalorder %s79, %s80
      %p94 = scmp.eq.s32.totalorder %s23, 7
      %p95 = por %p93, %p94
      %p97 = scmp.ne.s32.totalorder %s80, %s96
      %p98 = scmp.eq.s32.totalorder %s23, 0
      %p99 = por %p97, %p98
      %s100 = ssub.s32 %s24, %s43
      %s101 = ssub.s32 %s25, %s39
      %s102 = sor.u32 %s100, %s101
      %p103 = scmp.eq.s32.totalorder %s102, 0
      %s105 = sadd.s32 %s104, 1
      %s106 = scalar_select %p103, %s104, %s105
      %p109 = pneg %p103
      %p110 = scmp.eq.s32.totalorder %s17, 7
      %p111 = por %p109, %p110
      %p112 = scmp.ne.s32.totalorder %s104, %s107
      %p113 = scmp.eq.s32.totalorder %s17, 0
      %p114 = por %p112, %p113
      %p115 = scmp.ne.s32.totalorder %s104, %s107
      %p116 = scmp.eq.s32.totalorder %s22, 7
      %p117 = por %p115, %p116
      %p118 = scmp.ne.s32.totalorder %s107, %s108
      %p119 = scmp.eq.s32.totalorder %s22, 0
      %p120 = por %p118, %p119
      %p121 = scmp.ne.s32.totalorder %s107, %s108
      %p122 = scmp.eq.s32.totalorder %s23, 7
      %p123 = por %p121, %p122
      %p125 = scmp.ne.s32.totalorder %s108, %s124
      %p126 = scmp.eq.s32.totalorder %s23, 0
      %p127 = por %p125, %p126
      %s128 = ssub.s32 %s24, %s43
      %s129 = ssub.s32 %s25, %s39
      %s130 = sor.u32 %s128, %s129
      %p131 = scmp.eq.s32.totalorder %s130, 0
      %s133 = sadd.s32 %s132, 1
      %s134 = scalar_select %p131, %s132, %s133
      %p137 = pneg %p131
      %p138 = scmp.eq.s32.totalorder %s17, 7
      %p139 = por %p137, %p138
      %p140 = scmp.ne.s32.totalorder %s132, %s135
      %p141 = scmp.eq.s32.totalorder %s17, 0
      %p142 = por %p140, %p141
      %p143 = scmp.ne.s32.totalorder %s132, %s135
      %p144 = scmp.eq.s32.totalorder %s22, 7
      %p145 = por %p143, %p144
      %p146 = scmp.ne.s32.totalorder %s135, %s136
      %p147 = scmp.eq.s32.totalorder %s22, 0
      %p148 = por %p146, %p147
      %p149 = scmp.ne.s32.totalorder %s135, %s136
      %p150 = scmp.eq.s32.totalorder %s23, 7
      %p151 = por %p149, %p150
      %p153 = scmp.ne.s32.totalorder %s136, %s152
      %p154 = scmp.eq.s32.totalorder %s23, 0
      %p155 = por %p153, %p154
      %s156 = ssub.s32 %s24, %s43
      %s157 = ssub.s32 %s25, %s39
      %s158 = sor.u32 %s156, %s157
      %p159 = scmp.eq.s32.totalorder %s158, 0
      %s161 = sadd.s32 %s160, 1
      %s162 = scalar_select %p159, %s160, %s161
      %p165 = pneg %p159
      %p166 = scmp.eq.s32.totalorder %s17, 7
      %p167 = por %p165, %p166
      %p168 = scmp.ne.s32.totalorder %s160, %s163
      %p169 = scmp.eq.s32.totalorder %s17, 0
      %p170 = por %p168, %p169
      %p171 = scmp.ne.s32.totalorder %s160, %s163
      %p172 = scmp.eq.s32.totalorder %s22, 7
      %p173 = por %p171, %p172
      %p174 = scmp.ne.s32.totalorder %s163, %s164
      %p175 = scmp.eq.s32.totalorder %s22, 0
      %p176 = por %p174, %p175
      %p177 = scmp.ne.s32.totalorder %s163, %s164
      %p178 = scmp.eq.s32.totalorder %s23, 7
      %p179 = por %p177, %p178
      %p181 = scmp.ne.s32.totalorder %s164, %s180
      %p182 = scmp.eq.s32.totalorder %s23, 0
      %p183 = por %p181, %p182
      %p184 = scmp.le.s32.totalorder 1, %s17
      %p185 = scmp.lt.s32.totalorder %s17, 9
      %p186 = pnand %p184, %p185
      %p187 = pneg %p186
      // Predicated region
      $region9: #{tpu_custom_call.1} parent=5 // pred_check
        _
      $region10: #{tpu_custom_call.1} parent=5 // pred_check_branch
        %189 = sbr.rel (%p186) target = $region12
      $region11: #{tpu_custom_call.1} parent=5 // pred_region
        %s190 = ssub.s32 %s17, 1
        // Predicated region
        $region13: #{tpu_custom_call.1} parent=11 // pred_check
          %p191 = pneg %p92
        $region14: #{tpu_custom_call.1} parent=11 // pred_check_branch
          %193 = sbr.rel (%p191) target = $region16
        $region15: #{tpu_custom_call.1} parent=11 // pred_region
          %s194 = smul.u32 19, %s29
          %p195 = scmp.lt.s32.totalorder %s194, 18
          %s196 = scalar_select %p195, %s194, 18
          %p197 = scmp.lt.s32.totalorder %s28, 0
          %s198 = scalar_select %p197, %s28, 0
          %s199 = sadd.s32 %s198, %s196
          %s200 = smul.addr %s199, 4
          %s201 = scalar_lea.vmem %s1, %s200
          %s202 = smul.u32 19, %s29
        $region16: #{tpu_custom_call.1} parent=11 // pred_fallthru
          _
      $region12: #{tpu_custom_call.1} parent=5 // pred_fallthru
        _
      %p203 = scmp.lt.s32.totalorder %s17, 8
      // Predicated region
      $region17: #{tpu_custom_call.1} parent=5 // pred_check
        %p204 = pneg %p203
      $region18: #{tpu_custom_call.1} parent=5 // pred_check_branch
        %206 = sbr.rel (%p204) target = $region20
      $region19: #{tpu_custom_call.1} parent=5 // pred_region
        // Predicated region
        $region21: #{tpu_custom_call.1} parent=19 // pred_check
          %p207 = pneg %p58
        $region22: #{tpu_custom_call.1} parent=19 // pred_check_branch
          %209 = sbr.rel (%p207) target = $region24
        $region23: #{tpu_custom_call.1} parent=19 // pred_region
          %s210 = smul.u32 32, %s24
          %s211 = smul.u32 2, %s26
          %p212 = scmp.lt.s32.totalorder %s210, 255
          %s213 = scalar_select %p212, %s210, 255
          %p214 = scmp.lt.s32.totalorder %s211, 1
          %s215 = scalar_select %p214, %s211, 1
          %s216 = smul.addr %s213, 2
          %s217 = sadd.s32 %s215, %s216
          %s218 = smul.addr %s217, 4
          %s219 = scalar_lea.vmem %s0, %s218
          %s220 = smul.u32 32, %s24
          %s221 = smul.u32 2, %s26
        $region24: #{tpu_custom_call.1} parent=19 // pred_fallthru
          _
      $region20: #{tpu_custom_call.1} parent=5 // pred_fallthru
        _
      %p222 = scmp.le.s32.totalorder 1, %s17
      %p223 = scmp.lt.s32.totalorder %s17, 9
      %p224 = pnand %p222, %p223
      %p225 = pneg %p224
      // Predicated region
      $region25: #{tpu_custom_call.1} parent=5 // pred_check
        _
      $region26: #{tpu_custom_call.1} parent=5 // pred_check_branch
        %227 = sbr.rel (%p224) target = $region28
      $region27: #{tpu_custom_call.1} parent=5 // pred_region
        %s228 = ssub.s32 %s17, 1
        %s229 = smul.u32 32, %s27
        %s230 = smul.u32 2, %s29
        %p231 = scmp.lt.s32.totalorder %s229, 255
        %s232 = scalar_select %p231, %s229, 255
        %p233 = scmp.lt.s32.totalorder %s230, 1
        %s234 = scalar_select %p233, %s230, 1
        %s235 = smul.addr %s232, 2
        %s236 = sadd.s32 %s234, %s235
        %s237 = smul.addr %s236, 4
        %s238 = scalar_lea.vmem %s0, %s237
        %p239 = pneg %p64
        %p240 = pneg %p61
        %s241 = smul.u32 19, %s29
        %p242 = scmp.lt.s32.totalorder %s241, 18
        %s243 = scalar_select %p242, %s241, 18
        %p244 = scmp.lt.s32.totalorder %s28, 0
        %s245 = scalar_select %p244, %s28, 0
        %s246 = sadd.s32 %s245, %s243
        %s247 = smul.addr %s246, 4
        %s248 = scalar_lea.vmem %s1, %s247
        %p249 = pneg %p92
        %p250 = pneg %p89
        %p251 = pneg %p120
        %p252 = pneg %p117
        %s253 = smul.u32 32, %s27
        %p254 = scmp.lt.s32.totalorder %s253, 255
        %s255 = scalar_select %p254, %s253, 255
        %p256 = scmp.lt.s32.totalorder %s28, 0
        %s257 = scalar_select %p256, %s28, 0
        %s258 = sadd.s32 %s257, %s255
        %s259 = smul.addr %s258, 4
        %s260 = scalar_lea.vmem %s2, %s259
        %p261 = pneg %p148
        %p262 = pneg %p145
        %s263 = sand.u32 %s135, 1
        %s264 = scalar_lea.sflag [#allocation4], %s263
        %s265 = sand.u32 %s135, 1
        %s266 = scalar_lea.vmem [#allocation3], %s265
        %p267 = pneg %p176
        %p268 = pneg %p173
        %s269 = sand.u32 %s163, 1
        %s270 = scalar_lea.sflag [#allocation6], %s269
        %s271 = sand.u32 %s163, 1
        %s272 = scalar_lea.vmem [#allocation5], %s271
        %s273 = smul.u32 32, %s27
        %s274 = smul.u32 2, %s29
        %p275 = scmp.lt.s32.totalorder %s273, 255
        %s276 = scalar_select %p275, %s273, 255
        %p277 = scmp.lt.s32.totalorder %s274, 1
        %s278 = scalar_select %p277, %s274, 1
        %s279 = smul.addr %s276, 2
        %s280 = sadd.s32 %s278, %s279
        %s281 = smul.addr %s280, 4
        %s282 = scalar_lea.vmem %s0, %s281
        %s283 = smul.u32 32, %s27
        %s284 = smul.u32 2, %s29
        %s285 = smul.u32 19, %s29
        %p286 = scmp.lt.s32.totalorder %s285, 18
        %s287 = scalar_select %p286, %s285, 18
        %p288 = scmp.lt.s32.totalorder %s28, 0
        %s289 = scalar_select %p288, %s28, 0
        %s290 = sadd.s32 %s289, %s287
        %s291 = smul.addr %s290, 4
        %s292 = scalar_lea.vmem %s1, %s291
        %s293 = smul.u32 19, %s29
        %s294 = smul.u32 32, %s27
        %p295 = scmp.lt.s32.totalorder %s294, 255
        %s296 = scalar_select %p295, %s294, 255
        %p297 = scmp.lt.s32.totalorder %s28, 0
        %s298 = scalar_select %p297, %s28, 0
        %s299 = sadd.s32 %s298, %s296
        %s300 = smul.addr %s299, 4
        %s301 = scalar_lea.vmem %s2, %s300
        %s302 = smul.u32 32, %s27
        %p304 = scmp.eq.s32.totalorder %s29, 0
        // Predicated region
        $region29: #{tpu_custom_call.1} parent=27 // pred_check
          %p305 = pneg %p304
        $region30: #{tpu_custom_call.1} parent=27 // pred_check_branch
          %307 = sbr.rel (%p305) target = $region32
        $region31: #{tpu_custom_call.1} parent=27 // pred_region
          %vm308 = vcmask 523264
          %309 = vst.msk [vmem:[#allocation2] sm:$0xff] %vm308, 0.0
          %310 = vst.msk [vmem:[#allocation2 + $0x8] sm:$0xff] %vm308, 0.0
          %311 = vst.msk [vmem:[#allocation2 + $0x10] sm:$0xff] %vm308, 0.0
          %312 = vst.msk [vmem:[#allocation2 + $0x18] sm:$0xff] %vm308, 0.0
          %313 = vst.msk [vmem:[#allocation2 + $0x20] sm:$0xff] %vm308, 0.0
          %314 = vst.msk [vmem:[#allocation2 + $0x28] sm:$0xff] %vm308, 0.0
          %315 = vst.msk [vmem:[#allocation2 + $0x30] sm:$0xff] %vm308, 0.0
          %316 = vst.msk [vmem:[#allocation2 + $0x38] sm:$0xff] %vm308, 0.0
          %317 = vst.msk [vmem:[#allocation2 + $0x40] sm:$0xff] %vm308, 0.0
          %318 = vst.msk [vmem:[#allocation2 + $0x48] sm:$0xff] %vm308, 0.0
          %319 = vst.msk [vmem:[#allocation2 + $0x50] sm:$0xff] %vm308, 0.0
          %320 = vst.msk [vmem:[#allocation2 + $0x58] sm:$0xff] %vm308, 0.0
          %321 = vst.msk [vmem:[#allocation2 + $0x60] sm:$0xff] %vm308, 0.0
          %322 = vst.msk [vmem:[#allocation2 + $0x68] sm:$0xff] %vm308, 0.0
          %323 = vst.msk [vmem:[#allocation2 + $0x70] sm:$0xff] %vm308, 0.0
          %324 = vst.msk [vmem:[#allocation2 + $0x78] sm:$0xff] %vm308, 0.0
          %325 = vst.msk [vmem:[#allocation2 + $0x80] sm:$0xff] %vm308, 0.0
          %326 = vst.msk [vmem:[#allocation2 + $0x88] sm:$0xff] %vm308, 0.0
          %327 = vst.msk [vmem:[#allocation2 + $0x90] sm:$0xff] %vm308, 0.0
          %328 = vst.msk [vmem:[#allocation2 + $0x98] sm:$0xff] %vm308, 0.0
          %329 = vst.msk [vmem:[#allocation2 + $0xa0] sm:$0xff] %vm308, 0.0
          %330 = vst.msk [vmem:[#allocation2 + $0xa8] sm:$0xff] %vm308, 0.0
          %331 = vst.msk [vmem:[#allocation2 + $0xb0] sm:$0xff] %vm308, 0.0
          %332 = vst.msk [vmem:[#allocation2 + $0xb8] sm:$0xff] %vm308, 0.0
          %333 = vst.msk [vmem:[#allocation2 + $0xc0] sm:$0xff] %vm308, 0.0
          %334 = vst.msk [vmem:[#allocation2 + $0xc8] sm:$0xff] %vm308, 0.0
          %335 = vst.msk [vmem:[#allocation2 + $0xd0] sm:$0xff] %vm308, 0.0
          %336 = vst.msk [vmem:[#allocation2 + $0xd8] sm:$0xff] %vm308, 0.0
          %337 = vst.msk [vmem:[#allocation2 + $0xe0] sm:$0xff] %vm308, 0.0
          %338 = vst.msk [vmem:[#allocation2 + $0xe8] sm:$0xff] %vm308, 0.0
          %339 = vst.msk [vmem:[#allocation2 + $0xf0] sm:$0xff] %vm308, 0.0
          %340 = vst.msk [vmem:[#allocation2 + $0xf8] sm:$0xff] %vm308, 0.0
        $region32: #{tpu_custom_call.1} parent=27 // pred_fallthru
          _
        %v341 = vld [vmem:[#allocation2] sm:$0xff]
        %v342 = vld [vmem:[#allocation2 + $0x8] sm:$0xff]
        %v343 = vld [vmem:[#allocation2 + $0x10] sm:$0xff]
        %v344 = vld [vmem:[#allocation2 + $0x18] sm:$0xff]
        %v345 = vld [vmem:[#allocation2 + $0x20] sm:$0xff]
        %v346 = vld [vmem:[#allocation2 + $0x28] sm:$0xff]
        %v347 = vld [vmem:[#allocation2 + $0x30] sm:$0xff]
        %v348 = vld [vmem:[#allocation2 + $0x38] sm:$0xff]
        %v349 = vld [vmem:[#allocation2 + $0x40] sm:$0xff]
        %v350 = vld [vmem:[#allocation2 + $0x48] sm:$0xff]
        %v351 = vld [vmem:[#allocation2 + $0x50] sm:$0xff]
        %v352 = vld [vmem:[#allocation2 + $0x58] sm:$0xff]
        %v353 = vld [vmem:[#allocation2 + $0x60] sm:$0xff]
        %v354 = vld [vmem:[#allocation2 + $0x68] sm:$0xff]
        %v355 = vld [vmem:[#allocation2 + $0x70] sm:$0xff]
        %v356 = vld [vmem:[#allocation2 + $0x78] sm:$0xff]
        %v357 = vld [vmem:[#allocation2 + $0x80] sm:$0xff]
        %v358 = vld [vmem:[#allocation2 + $0x88] sm:$0xff]
        %v359 = vld [vmem:[#allocation2 + $0x90] sm:$0xff]
        %v360 = vld [vmem:[#allocation2 + $0x98] sm:$0xff]
        %v361 = vld [vmem:[#allocation2 + $0xa0] sm:$0xff]
        %v362 = vld [vmem:[#allocation2 + $0xa8] sm:$0xff]
        %v363 = vld [vmem:[#allocation2 + $0xb0] sm:$0xff]
        %v364 = vld [vmem:[#allocation2 + $0xb8] sm:$0xff]
        %v365 = vld [vmem:[#allocation2 + $0xc0] sm:$0xff]
        %v366 = vld [vmem:[#allocation2 + $0xc8] sm:$0xff]
        %v367 = vld [vmem:[#allocation2 + $0xd0] sm:$0xff]
        %v368 = vld [vmem:[#allocation2 + $0xd8] sm:$0xff]
        %v369 = vld [vmem:[#allocation2 + $0xe0] sm:$0xff]
        %v370 = vld [vmem:[#allocation2 + $0xe8] sm:$0xff]
        %v371 = vld [vmem:[#allocation2 + $0xf0] sm:$0xff]
        %v372 = vld [vmem:[#allocation2 + $0xf8] sm:$0xff]
        %v373 = vld [vmem:[%s282] sm:$0xff]
        %v374 = vld [vmem:[%s282 + $0x8] sm:$0xff]
        %v375 = vld [vmem:[%s282 + $0x10] sm:$0xff]
        %v376 = vld [vmem:[%s282 + $0x18] sm:$0xff]
        %v377 = vld [vmem:[%s282 + $0x20] sm:$0xff]
        %v378 = vld [vmem:[%s282 + $0x28] sm:$0xff]
        %v379 = vld [vmem:[%s282 + $0x30] sm:$0xff]
        %v380 = vld [vmem:[%s282 + $0x38] sm:$0xff]
        %v381 = vld [vmem:[%s282 + $0x40] sm:$0xff]
        %v382 = vld [vmem:[%s282 + $0x48] sm:$0xff]
        %v383 = vld [vmem:[%s282 + $0x50] sm:$0xff]
        %v384 = vld [vmem:[%s282 + $0x58] sm:$0xff]
        %v385 = vld [vmem:[%s282 + $0x60] sm:$0xff]
        %v386 = vld [vmem:[%s282 + $0x68] sm:$0xff]
        %v387 = vld [vmem:[%s282 + $0x70] sm:$0xff]
        %v388 = vld [vmem:[%s282 + $0x78] sm:$0xff]
        %v389 = vld [vmem:[%s282 + $0x80] sm:$0xff]
        %v390 = vld [vmem:[%s282 + $0x88] sm:$0xff]
        %v391 = vld [vmem:[%s282 + $0x90] sm:$0xff]
        %v392 = vld [vmem:[%s282 + $0x98] sm:$0xff]
        %v393 = vld [vmem:[%s282 + $0xa0] sm:$0xff]
        %v394 = vld [vmem:[%s282 + $0xa8] sm:$0xff]
        %v395 = vld [vmem:[%s282 + $0xb0] sm:$0xff]
        %v396 = vld [vmem:[%s282 + $0xb8] sm:$0xff]
        %v397 = vld [vmem:[%s282 + $0xc0] sm:$0xff]
        %v398 = vld [vmem:[%s282 + $0xc8] sm:$0xff]
        %v399 = vld [vmem:[%s282 + $0xd0] sm:$0xff]
        %v400 = vld [vmem:[%s282 + $0xd8] sm:$0xff]
        %v401 = vld [vmem:[%s282 + $0xe0] sm:$0xff]
        %v402 = vld [vmem:[%s282 + $0xe8] sm:$0xff]
        %v403 = vld [vmem:[%s282 + $0xf0] sm:$0xff]
        %v404 = vld [vmem:[%s282 + $0xf8] sm:$0xff]
        %v405 = vld [vmem:[%s292] sm:$0xf]
        %v406 = vld [vmem:[%s292 + $0x4] sm:$0xf]
        %v407 = vld [vmem:[%s292 + $0x8] sm:$0xf]
        %v408 = vld [vmem:[%s292 + $0xc] sm:$0xf]
        %v409 = vld [vmem:[%s292 + $0x10] sm:$0xf]
        %v410 = vld [vmem:[%s292 + $0x14] sm:$0xf]
        %v411 = vld [vmem:[%s292 + $0x18] sm:$0xf]
        %v412 = vld [vmem:[%s292 + $0x1c] sm:$0xf]
        %v413 = vld [vmem:[%s292 + $0x20] sm:$0xf]
        %v414 = vld [vmem:[%s292 + $0x24] sm:$0xf]
        %v415 = vld [vmem:[%s292 + $0x28] sm:$0xf]
        %v416 = vld [vmem:[%s292 + $0x2c] sm:$0xf]
        %v417 = vld [vmem:[%s292 + $0x30] sm:$0xf]
        %v418 = vld [vmem:[%s292 + $0x34] sm:$0xf]
        %v419 = vld [vmem:[%s292 + $0x38] sm:$0xf]
        %v420 = vld [vmem:[%s292 + $0x3c] sm:$0xf]
        %v421 = vld [vmem:[%s292 + $0x40] sm:$0xf]
        %v422 = vld [vmem:[%s292 + $0x44] sm:$0xf]
        %v423 = vld [vmem:[%s292 + $0x48] sm:$0x3]
        %v456 = vunpack.c.l.b16 %v373
        %v457 = vunpack.c.h.b16 %v373
        %v458 = vunpack.c.l.b16 %v374
        %v459 = vunpack.c.h.b16 %v374
        %v460 = vunpack.c.l.b16 %v375
        %v461 = vunpack.c.h.b16 %v375
        %v462 = vunpack.c.l.b16 %v376
        %v463 = vunpack.c.h.b16 %v376
        %v464 = vunpack.c.l.b16 %v377
        %v465 = vunpack.c.h.b16 %v377
        %v466 = vunpack.c.l.b16 %v378
        %v467 = vunpack.c.h.b16 %v378
        %v468 = vunpack.c.l.b16 %v379
        %v469 = vunpack.c.h.b16 %v379
        %v470 = vunpack.c.l.b16 %v380
        %v471 = vunpack.c.h.b16 %v380
        %v472 = vunpack.c.l.b16 %v381
        %v473 = vunpack.c.h.b16 %v381
        %v474 = vunpack.c.l.b16 %v382
        %v475 = vunpack.c.h.b16 %v382
        %v476 = vunpack.c.l.b16 %v383
        %v477 = vunpack.c.h.b16 %v383
        %v478 = vunpack.c.l.b16 %v384
        %v479 = vunpack.c.h.b16 %v384
        %v480 = vunpack.c.l.b16 %v385
        %v481 = vunpack.c.h.b16 %v385
        %v482 = vunpack.c.l.b16 %v386
        %v483 = vunpack.c.h.b16 %v386
        %v484 = vunpack.c.l.b16 %v387
        %v485 = vunpack.c.h.b16 %v387
        %v486 = vunpack.c.l.b16 %v388
        %v487 = vunpack.c.h.b16 %v388
        %v488 = vunpack.c.l.b16 %v389
        %v489 = vunpack.c.h.b16 %v389
        %v490 = vunpack.c.l.b16 %v390
        %v491 = vunpack.c.h.b16 %v390
        %v492 = vunpack.c.l.b16 %v391
        %v493 = vunpack.c.h.b16 %v391
        %v494 = vunpack.c.l.b16 %v392
        %v495 = vunpack.c.h.b16 %v392
        %v496 = vunpack.c.l.b16 %v393
        %v497 = vunpack.c.h.b16 %v393
        %v498 = vunpack.c.l.b16 %v394
        %v499 = vunpack.c.h.b16 %v394
        %v500 = vunpack.c.l.b16 %v395
        %v501 = vunpack.c.h.b16 %v395
        %v502 = vunpack.c.l.b16 %v396
        %v503 = vunpack.c.h.b16 %v396
        %v504 = vunpack.c.l.b16 %v397
        %v505 = vunpack.c.h.b16 %v397
        %v506 = vunpack.c.l.b16 %v398
        %v507 = vunpack.c.h.b16 %v398
        %v508 = vunpack.c.l.b16 %v399
        %v509 = vunpack.c.h.b16 %v399
        %v510 = vunpack.c.l.b16 %v400
        %v511 = vunpack.c.h.b16 %v400
        %v512 = vunpack.c.l.b16 %v401
        %v513 = vunpack.c.h.b16 %v401
        %v514 = vunpack.c.l.b16 %v402
        %v515 = vunpack.c.h.b16 %v402
        %v516 = vunpack.c.l.b16 %v403
        %v517 = vunpack.c.h.b16 %v403
        %v518 = vunpack.c.l.b16 %v404
        %v519 = vunpack.c.h.b16 %v404
        %v520 = vpack.c.b16 %v458, %v456
        %v521 = vpack.c.b16 %v459, %v457
        %v522 = vpack.c.b16 %v462, %v460
        %v523 = vpack.c.b16 %v463, %v461
        %v524 = vpack.c.b16 %v466, %v464
        %v525 = vpack.c.b16 %v467, %v465
        %v526 = vpack.c.b16 %v470, %v468
        %v527 = vpack.c.b16 %v471, %v469
        %v528 = vpack.c.b16 %v474, %v472
        %v529 = vpack.c.b16 %v475, %v473
        %v530 = vpack.c.b16 %v478, %v476
        %v531 = vpack.c.b16 %v479, %v477
        %v532 = vpack.c.b16 %v482, %v480
        %v533 = vpack.c.b16 %v483, %v481
        %v534 = vpack.c.b16 %v486, %v484
        %v535 = vpack.c.b16 %v487, %v485
        %v536 = vpack.c.b16 %v490, %v488
        %v537 = vpack.c.b16 %v491, %v489
        %v538 = vpack.c.b16 %v494, %v492
        %v539 = vpack.c.b16 %v495, %v493
        %v540 = vpack.c.b16 %v498, %v496
        %v541 = vpack.c.b16 %v499, %v497
        %v542 = vpack.c.b16 %v502, %v500
        %v543 = vpack.c.b16 %v503, %v501
        %v544 = vpack.c.b16 %v506, %v504
        %v545 = vpack.c.b16 %v507, %v505
        %v546 = vpack.c.b16 %v510, %v508
        %v547 = vpack.c.b16 %v511, %v509
        %v548 = vpack.c.b16 %v514, %v512
        %v549 = vpack.c.b16 %v515, %v513
        %v550 = vpack.c.b16 %v518, %v516
        %v551 = vpack.c.b16 %v519, %v517
        %v587 = vunpack.c.l.b16 %v405
        %v588 = vunpack.c.l.b16 %v406
        %v589 = vunpack.c.l.b16 %v407
        %v590 = vunpack.c.l.b16 %v408
        %v591 = vunpack.c.l.b16 %v409
        %v592 = vunpack.c.l.b16 %v410
        %v593 = vunpack.c.l.b16 %v411
        %v594 = vunpack.c.l.b16 %v412
        %v595 = vunpack.c.l.b16 %v413
        %v596 = vunpack.c.l.b16 %v414
        %v597 = vunpack.c.l.b16 %v415
        %v598 = vunpack.c.l.b16 %v416
        %v599 = vunpack.c.l.b16 %v417
        %v600 = vunpack.c.l.b16 %v418
        %v601 = vunpack.c.l.b16 %v419
        %v602 = vunpack.c.l.b16 %v420
        %v603 = vunpack.c.l.b16 %v421
        %v604 = vunpack.c.l.b16 %v422
        %v605 = vunpack.c.l.b16 %v423
        %v606 = vpack.c.b16 %v588, %v587
        %v607 = vpack.c.b16 %v590, %v589
        %v608 = vpack.c.b16 %v592, %v591
        %v609 = vpack.c.b16 %v594, %v593
        %v610 = vpack.c.b16 %v596, %v595
        %v611 = vpack.c.b16 %v598, %v597
        %v612 = vpack.c.b16 %v600, %v599
        %v613 = vpack.c.b16 %v602, %v601
        %v614 = vpack.c.b16 %v604, %v603
        %v615 = vpack.c.b16 %v605, %v605
        %vm625 = vcmask 154624
        %v627 = vsel %vm625, %v521, 0
        %v630 = vsel %vm625, %v523, 0
        %v633 = vsel %vm625, %v525, 0
        %v636 = vsel %vm625, %v527, 0
        %v639 = vsel %vm625, %v529, 0
        %v642 = vsel %vm625, %v531, 0
        %v645 = vsel %vm625, %v533, 0
        %v648 = vsel %vm625, %v535, 0
        %v651 = vsel %vm625, %v537, 0
        %v654 = vsel %vm625, %v539, 0
        %v657 = vsel %vm625, %v541, 0
        %v660 = vsel %vm625, %v543, 0
        %v663 = vsel %vm625, %v545, 0
        %v666 = vsel %vm625, %v547, 0
        %v669 = vsel %vm625, %v549, 0
        %v672 = vsel %vm625, %v551, 0
        %vm674 = vcmask 1040384
        %vm675 = vcmask 1041408
        %v676 = vsel %vm674, 4294967295, 65535
        %v677 = vsel %vm675, %v676, 0
        %v679 = vand.u32 %v615, %v677
        %681 = vmatprep.subr.bf16.mxu0 0
        %682 = vmatpush1.bf16.msra.mxu0 %v613
        %683 = vmatprep.subr.bf16.mxu0 0
        %684 = vmatpush1.bf16.msra.mxu0 %v612
        %685 = vmatprep.subr.bf16.mxu0 0
        %686 = vmatpush1.bf16.msra.mxu0 %v611
        %687 = vmatprep.subr.bf16.mxu0 0
        %688 = vmatpush1.bf16.msra.mxu0 %v610
        %689 = vmatprep.subr.bf16.mxu0 0
        %690 = vmatpush1.bf16.msra.mxu0 %v609
        %691 = vmatprep.subr.bf16.mxu0 0
        %692 = vmatpush1.bf16.msra.mxu0 %v608
        %693 = vmatprep.subr.bf16.mxu0 0
        %694 = vmatpush1.bf16.msra.mxu0 %v607
        %695 = vmatprep.subr.bf16.mxu0 0
        %696 = vmatpush1.bf16.msra.mxu0 %v606
        %697 = vmatprep.subr.bf16.mxu0 0
        %698 = vmatpush2.bf16.msra.mxu0 0
        %699 = vmatprep.subr.bf16.mxu0 0
        %700 = vmatpush2.bf16.msra.mxu0 0
        %701 = vmatprep.subr.bf16.mxu0 0
        %702 = vmatpush2.bf16.msra.mxu0 0
        %703 = vmatprep.subr.bf16.mxu0 0
        %704 = vmatpush2.bf16.msra.mxu0 0
        %705 = vmatprep.subr.bf16.mxu0 0
        %706 = vmatpush2.bf16.msra.mxu0 0
        %707 = vmatprep.subr.bf16.mxu0 0
        %708 = vmatpush2.bf16.msra.mxu0 0
        %709 = vmatprep.subr.bf16.mxu0 0
        %710 = vmatpush2.bf16.msra.mxu0 %v679
        %711 = vmatprep.subr.bf16.mxu0 0
        %712 = vmatpush2.bf16.msra.mxu0 %v614
        %713 = vmatprep.mubr.bf16.mxu0 %v627
        %714 = vmatmul.mubr.bf16.gmra.mxu0 %v520
        %v715 = vpop.f32.mrf.mxu0
        %v716 = vadd.f32 0.0, %v715
        %v717 = vpop.f32.mrf.mxu0
        %v718 = vpop.f32.mrf.mxu0
        %v719 = vadd.f32 0.0, %v718
        %v720 = vpop.f32.mrf.mxu0
        %721 = vmatprep.mubr.bf16.mxu0 %v630
        %722 = vmatmul.mubr.bf16.gmra.mxu0 %v522
        %v723 = vpop.f32.mrf.mxu0
        %v724 = vadd.f32 0.0, %v723
        %v725 = vpop.f32.mrf.mxu0
        %v726 = vpop.f32.mrf.mxu0
        %v727 = vadd.f32 0.0, %v726
        %v728 = vpop.f32.mrf.mxu0
        %729 = vmatprep.mubr.bf16.mxu0 %v633
        %730 = vmatmul.mubr.bf16.gmra.mxu0 %v524
        %v731 = vpop.f32.mrf.mxu0
        %v732 = vadd.f32 0.0, %v731
        %v733 = vpop.f32.mrf.mxu0
        %v734 = vpop.f32.mrf.mxu0
        %v735 = vadd.f32 0.0, %v734
        %v736 = vpop.f32.mrf.mxu0
        %737 = vmatprep.mubr.bf16.mxu0 %v636
        %738 = vmatmul.mubr.bf16.gmra.mxu0 %v526
        %v739 = vpop.f32.mrf.mxu0
        %v740 = vadd.f32 0.0, %v739
        %v741 = vpop.f32.mrf.mxu0
        %v742 = vpop.f32.mrf.mxu0
        %v743 = vadd.f32 0.0, %v742
        %v744 = vpop.f32.mrf.mxu0
        %745 = vmatprep.mubr.bf16.mxu0 %v639
        %746 = vmatmul.mubr.bf16.gmra.mxu0 %v528
        %v747 = vpop.f32.mrf.mxu0
        %v748 = vadd.f32 0.0, %v747
        %v749 = vpop.f32.mrf.mxu0
        %v750 = vpop.f32.mrf.mxu0
        %v751 = vadd.f32 0.0, %v750
        %v752 = vpop.f32.mrf.mxu0
        %753 = vmatprep.mubr.bf16.mxu0 %v642
        %754 = vmatmul.mubr.bf16.gmra.mxu0 %v530
        %v755 = vpop.f32.mrf.mxu0
        %v756 = vadd.f32 0.0, %v755
        %v757 = vpop.f32.mrf.mxu0
        %v758 = vpop.f32.mrf.mxu0
        %v759 = vadd.f32 0.0, %v758
        %v760 = vpop.f32.mrf.mxu0
        %761 = vmatprep.mubr.bf16.mxu0 %v645
        %762 = vmatmul.mubr.bf16.gmra.mxu0 %v532
        %v763 = vpop.f32.mrf.mxu0
        %v764 = vadd.f32 0.0, %v763
        %v765 = vpop.f32.mrf.mxu0
        %v766 = vpop.f32.mrf.mxu0
        %v767 = vadd.f32 0.0, %v766
        %v768 = vpop.f32.mrf.mxu0
        %769 = vmatprep.mubr.bf16.mxu0 %v648
        %770 = vmatmul.mubr.bf16.gmra.mxu0 %v534
        %v771 = vpop.f32.mrf.mxu0
        %v772 = vadd.f32 0.0, %v771
        %v773 = vpop.f32.mrf.mxu0
        %v774 = vpop.f32.mrf.mxu0
        %v775 = vadd.f32 0.0, %v774
        %v776 = vpop.f32.mrf.mxu0
        %777 = vmatprep.mubr.bf16.mxu0 %v651
        %778 = vmatmul.mubr.bf16.gmra.mxu0 %v536
        %v779 = vpop.f32.mrf.mxu0
        %v780 = vadd.f32 0.0, %v779
        %v781 = vpop.f32.mrf.mxu0
        %v782 = vpop.f32.mrf.mxu0
        %v783 = vadd.f32 0.0, %v782
        %v784 = vpop.f32.mrf.mxu0
        %785 = vmatprep.mubr.bf16.mxu0 %v654
        %786 = vmatmul.mubr.bf16.gmra.mxu0 %v538
        %v787 = vpop.f32.mrf.mxu0
        %v788 = vadd.f32 0.0, %v787
        %v789 = vpop.f32.mrf.mxu0
        %v790 = vpop.f32.mrf.mxu0
        %v791 = vadd.f32 0.0, %v790
        %v792 = vpop.f32.mrf.mxu0
        %793 = vmatprep.mubr.bf16.mxu0 %v657
        %794 = vmatmul.mubr.bf16.gmra.mxu0 %v540
        %v795 = vpop.f32.mrf.mxu0
        %v796 = vadd.f32 0.0, %v795
        %v797 = vpop.f32.mrf.mxu0
        %v798 = vpop.f32.mrf.mxu0
        %v799 = vadd.f32 0.0, %v798
        %v800 = vpop.f32.mrf.mxu0
        %801 = vmatprep.mubr.bf16.mxu0 %v660
        %802 = vmatmul.mubr.bf16.gmra.mxu0 %v542
        %v803 = vpop.f32.mrf.mxu0
        %v804 = vadd.f32 0.0, %v803
        %v805 = vpop.f32.mrf.mxu0
        %v806 = vpop.f32.mrf.mxu0
        %v807 = vadd.f32 0.0, %v806
        %v808 = vpop.f32.mrf.mxu0
        %809 = vmatprep.mubr.bf16.mxu0 %v663
        %810 = vmatmul.mubr.bf16.gmra.mxu0 %v544
        %v811 = vpop.f32.mrf.mxu0
        %v812 = vadd.f32 0.0, %v811
        %v813 = vpop.f32.mrf.mxu0
        %v814 = vpop.f32.mrf.mxu0
        %v815 = vadd.f32 0.0, %v814
        %v816 = vpop.f32.mrf.mxu0
        %817 = vmatprep.mubr.bf16.mxu0 %v666
        %818 = vmatmul.mubr.bf16.gmra.mxu0 %v546
        %v819 = vpop.f32.mrf.mxu0
        %v820 = vadd.f32 0.0, %v819
        %v821 = vpop.f32.mrf.mxu0
        %v822 = vpop.f32.mrf.mxu0
        %v823 = vadd.f32 0.0, %v822
        %v824 = vpop.f32.mrf.mxu0
        %825 = vmatprep.mubr.bf16.mxu0 %v669
        %826 = vmatmul.mubr.bf16.gmra.mxu0 %v548
        %v827 = vpop.f32.mrf.mxu0
        %v828 = vadd.f32 0.0, %v827
        %v829 = vpop.f32.mrf.mxu0
        %v830 = vpop.f32.mrf.mxu0
        %v831 = vadd.f32 0.0, %v830
        %v832 = vpop.f32.mrf.mxu0
        %833 = vmatprep.mubr.bf16.mxu0 %v672
        %834 = vmatmul.mubr.bf16.gmra.mxu0 %v550
        %v835 = vpop.f32.mrf.mxu0
        %v836 = vadd.f32 0.0, %v835
        %v837 = vpop.f32.mrf.mxu0
        %v838 = vpop.f32.mrf.mxu0
        %v839 = vadd.f32 0.0, %v838
        %v840 = vpop.f32.mrf.mxu0
        %841 = vdwg.mxu0
        %v842 = vadd.f32 %v341, %v716
        %v843 = vadd.f32 %v342, %v719
        %v844 = vadd.f32 %v343, %v724
        %v845 = vadd.f32 %v344, %v727
        %v846 = vadd.f32 %v345, %v732
        %v847 = vadd.f32 %v346, %v735
        %v848 = vadd.f32 %v347, %v740
        %v849 = vadd.f32 %v348, %v743
        %v850 = vadd.f32 %v349, %v748
        %v851 = vadd.f32 %v350, %v751
        %v852 = vadd.f32 %v351, %v756
        %v853 = vadd.f32 %v352, %v759
        %v854 = vadd.f32 %v353, %v764
        %v855 = vadd.f32 %v354, %v767
        %v856 = vadd.f32 %v355, %v772
        %v857 = vadd.f32 %v356, %v775
        %v858 = vadd.f32 %v357, %v780
        %v859 = vadd.f32 %v358, %v783
        %v860 = vadd.f32 %v359, %v788
        %v861 = vadd.f32 %v360, %v791
        %v862 = vadd.f32 %v361, %v796
        %v863 = vadd.f32 %v362, %v799
        %v864 = vadd.f32 %v363, %v804
        %v865 = vadd.f32 %v364, %v807
        %v866 = vadd.f32 %v365, %v812
        %v867 = vadd.f32 %v366, %v815
        %v868 = vadd.f32 %v367, %v820
        %v869 = vadd.f32 %v368, %v823
        %v870 = vadd.f32 %v369, %v828
        %v871 = vadd.f32 %v370, %v831
        %v872 = vadd.f32 %v371, %v836
        %v873 = vadd.f32 %v372, %v839
        %vm874 = vcmask 523264
        %875 = vst.msk [vmem:[#allocation2] sm:$0xff] %vm874, %v842
        %876 = vst.msk [vmem:[#allocation2 + $0x8] sm:$0xff] %vm874, %v843
        %877 = vst.msk [vmem:[#allocation2 + $0x10] sm:$0xff] %vm874, %v844
        %878 = vst.msk [vmem:[#allocation2 + $0x18] sm:$0xff] %vm874, %v845
        %879 = vst.msk [vmem:[#allocation2 + $0x20] sm:$0xff] %vm874, %v846
        %880 = vst.msk [vmem:[#allocation2 + $0x28] sm:$0xff] %vm874, %v847
        %881 = vst.msk [vmem:[#allocation2 + $0x30] sm:$0xff] %vm874, %v848
        %882 = vst.msk [vmem:[#allocation2 + $0x38] sm:$0xff] %vm874, %v849
        %883 = vst.msk [vmem:[#allocation2 + $0x40] sm:$0xff] %vm874, %v850
        %884 = vst.msk [vmem:[#allocation2 + $0x48] sm:$0xff] %vm874, %v851
        %885 = vst.msk [vmem:[#allocation2 + $0x50] sm:$0xff] %vm874, %v852
        %886 = vst.msk [vmem:[#allocation2 + $0x58] sm:$0xff] %vm874, %v853
        %887 = vst.msk [vmem:[#allocation2 + $0x60] sm:$0xff] %vm874, %v854
        %888 = vst.msk [vmem:[#allocation2 + $0x68] sm:$0xff] %vm874, %v855
        %889 = vst.msk [vmem:[#allocation2 + $0x70] sm:$0xff] %vm874, %v856
        %890 = vst.msk [vmem:[#allocation2 + $0x78] sm:$0xff] %vm874, %v857
        %891 = vst.msk [vmem:[#allocation2 + $0x80] sm:$0xff] %vm874, %v858
        %892 = vst.msk [vmem:[#allocation2 + $0x88] sm:$0xff] %vm874, %v859
        %893 = vst.msk [vmem:[#allocation2 + $0x90] sm:$0xff] %vm874, %v860
        %894 = vst.msk [vmem:[#allocation2 + $0x98] sm:$0xff] %vm874, %v861
        %895 = vst.msk [vmem:[#allocation2 + $0xa0] sm:$0xff] %vm874, %v862
        %896 = vst.msk [vmem:[#allocation2 + $0xa8] sm:$0xff] %vm874, %v863
        %897 = vst.msk [vmem:[#allocation2 + $0xb0] sm:$0xff] %vm874, %v864
        %898 = vst.msk [vmem:[#allocation2 + $0xb8] sm:$0xff] %vm874, %v865
        %899 = vst.msk [vmem:[#allocation2 + $0xc0] sm:$0xff] %vm874, %v866
        %900 = vst.msk [vmem:[#allocation2 + $0xc8] sm:$0xff] %vm874, %v867
        %901 = vst.msk [vmem:[#allocation2 + $0xd0] sm:$0xff] %vm874, %v868
        %902 = vst.msk [vmem:[#allocation2 + $0xd8] sm:$0xff] %vm874, %v869
        %903 = vst.msk [vmem:[#allocation2 + $0xe0] sm:$0xff] %vm874, %v870
        %904 = vst.msk [vmem:[#allocation2 + $0xe8] sm:$0xff] %vm874, %v871
        %905 = vst.msk [vmem:[#allocation2 + $0xf0] sm:$0xff] %vm874, %v872
        %906 = vst.msk [vmem:[#allocation2 + $0xf8] sm:$0xff] %vm874, %v873
        // Predicated region
        $region33: #{tpu_custom_call.1} parent=27 // pred_check
          %p907 = pneg %p304
        $region34: #{tpu_custom_call.1} parent=27 // pred_check_branch
          %909 = sbr.rel (%p907) target = $region36
        $region35: #{tpu_custom_call.1} parent=27 // pred_region
          %v910 = vld [vmem:[#allocation2] sm:$0xff]
          %v911 = vld [vmem:[#allocation2 + $0x8] sm:$0xff]
          %v912 = vld [vmem:[#allocation2 + $0x10] sm:$0xff]
          %v913 = vld [vmem:[#allocation2 + $0x18] sm:$0xff]
          %v914 = vld [vmem:[#allocation2 + $0x20] sm:$0xff]
          %v915 = vld [vmem:[#allocation2 + $0x28] sm:$0xff]
          %v916 = vld [vmem:[#allocation2 + $0x30] sm:$0xff]
          %v917 = vld [vmem:[#allocation2 + $0x38] sm:$0xff]
          %v918 = vld [vmem:[#allocation2 + $0x40] sm:$0xff]
          %v919 = vld [vmem:[#allocation2 + $0x48] sm:$0xff]
          %v920 = vld [vmem:[#allocation2 + $0x50] sm:$0xff]
          %v921 = vld [vmem:[#allocation2 + $0x58] sm:$0xff]
          %v922 = vld [vmem:[#allocation2 + $0x60] sm:$0xff]
          %v923 = vld [vmem:[#allocation2 + $0x68] sm:$0xff]
          %v924 = vld [vmem:[#allocation2 + $0x70] sm:$0xff]
          %v925 = vld [vmem:[#allocation2 + $0x78] sm:$0xff]
          %v926 = vld [vmem:[#allocation2 + $0x80] sm:$0xff]
          %v927 = vld [vmem:[#allocation2 + $0x88] sm:$0xff]
          %v928 = vld [vmem:[#allocation2 + $0x90] sm:$0xff]
          %v929 = vld [vmem:[#allocation2 + $0x98] sm:$0xff]
          %v930 = vld [vmem:[#allocation2 + $0xa0] sm:$0xff]
          %v931 = vld [vmem:[#allocation2 + $0xa8] sm:$0xff]
          %v932 = vld [vmem:[#allocation2 + $0xb0] sm:$0xff]
          %v933 = vld [vmem:[#allocation2 + $0xb8] sm:$0xff]
          %v934 = vld [vmem:[#allocation2 + $0xc0] sm:$0xff]
          %v935 = vld [vmem:[#allocation2 + $0xc8] sm:$0xff]
          %v936 = vld [vmem:[#allocation2 + $0xd0] sm:$0xff]
          %v937 = vld [vmem:[#allocation2 + $0xd8] sm:$0xff]
          %v938 = vld [vmem:[#allocation2 + $0xe0] sm:$0xff]
          %v939 = vld [vmem:[#allocation2 + $0xe8] sm:$0xff]
          %v940 = vld [vmem:[#allocation2 + $0xf0] sm:$0xff]
          %v941 = vld [vmem:[#allocation2 + $0xf8] sm:$0xff]
          %v942 = vpack.c.bf16 %v911, %v910
          %v943 = vpack.c.bf16 %v913, %v912
          %v944 = vpack.c.bf16 %v915, %v914
          %v945 = vpack.c.bf16 %v917, %v916
          %v946 = vpack.c.bf16 %v919, %v918
          %v947 = vpack.c.bf16 %v921, %v920
          %v948 = vpack.c.bf16 %v923, %v922
          %v949 = vpack.c.bf16 %v925, %v924
          %v950 = vpack.c.bf16 %v927, %v926
          %v951 = vpack.c.bf16 %v929, %v928
          %v952 = vpack.c.bf16 %v931, %v930
          %v953 = vpack.c.bf16 %v933, %v932
          %v954 = vpack.c.bf16 %v935, %v934
          %v955 = vpack.c.bf16 %v937, %v936
          %v956 = vpack.c.bf16 %v939, %v938
          %v957 = vpack.c.bf16 %v941, %v940
          %v974 = vunpack.c.l.b16 %v942
          %v975 = vunpack.c.h.b16 %v942
          %v976 = vunpack.c.l.b16 %v943
          %v977 = vunpack.c.h.b16 %v943
          %v978 = vunpack.c.l.b16 %v944
          %v979 = vunpack.c.h.b16 %v944
          %v980 = vunpack.c.l.b16 %v945
          %v981 = vunpack.c.h.b16 %v945
          %v982 = vunpack.c.l.b16 %v946
          %v983 = vunpack.c.h.b16 %v946
          %v984 = vunpack.c.l.b16 %v947
          %v985 = vunpack.c.h.b16 %v947
          %v986 = vunpack.c.l.b16 %v948
          %v987 = vunpack.c.h.b16 %v948
          %v988 = vunpack.c.l.b16 %v949
          %v989 = vunpack.c.h.b16 %v949
          %v990 = vunpack.c.l.b16 %v950
          %v991 = vunpack.c.h.b16 %v950
          %v992 = vunpack.c.l.b16 %v951
          %v993 = vunpack.c.h.b16 %v951
          %v994 = vunpack.c.l.b16 %v952
          %v995 = vunpack.c.h.b16 %v952
          %v996 = vunpack.c.l.b16 %v953
          %v997 = vunpack.c.h.b16 %v953
          %v998 = vunpack.c.l.b16 %v954
          %v999 = vunpack.c.h.b16 %v954
          %v1000 = vunpack.c.l.b16 %v955
          %v1001 = vunpack.c.h.b16 %v955
          %v1002 = vunpack.c.l.b16 %v956
          %v1003 = vunpack.c.h.b16 %v956
          %v1004 = vunpack.c.l.b16 %v957
          %v1005 = vunpack.c.h.b16 %v957
          %v1006 = vpack.c.b16 %v974, %v974
          %v1007 = vpack.c.b16 %v975, %v975
          %v1008 = vpack.c.b16 %v976, %v976
          %v1009 = vpack.c.b16 %v977, %v977
          %v1010 = vpack.c.b16 %v978, %v978
          %v1011 = vpack.c.b16 %v979, %v979
          %v1012 = vpack.c.b16 %v980, %v980
          %v1013 = vpack.c.b16 %v981, %v981
          %v1014 = vpack.c.b16 %v982, %v982
          %v1015 = vpack.c.b16 %v983, %v983
          %v1016 = vpack.c.b16 %v984, %v984
          %v1017 = vpack.c.b16 %v985, %v985
          %v1018 = vpack.c.b16 %v986, %v986
          %v1019 = vpack.c.b16 %v987, %v987
          %v1020 = vpack.c.b16 %v988, %v988
          %v1021 = vpack.c.b16 %v989, %v989
          %v1022 = vpack.c.b16 %v990, %v990
          %v1023 = vpack.c.b16 %v991, %v991
          %v1024 = vpack.c.b16 %v992, %v992
          %v1025 = vpack.c.b16 %v993, %v993
          %v1026 = vpack.c.b16 %v994, %v994
          %v1027 = vpack.c.b16 %v995, %v995
          %v1028 = vpack.c.b16 %v996, %v996
          %v1029 = vpack.c.b16 %v997, %v997
          %v1030 = vpack.c.b16 %v998, %v998
          %v1031 = vpack.c.b16 %v999, %v999
          %v1032 = vpack.c.b16 %v1000, %v1000
          %v1033 = vpack.c.b16 %v1001, %v1001
          %v1034 = vpack.c.b16 %v1002, %v1002
          %v1035 = vpack.c.b16 %v1003, %v1003
          %v1036 = vpack.c.b16 %v1004, %v1004
          %v1037 = vpack.c.b16 %v1005, %v1005
          %vm1070 = vcmask 519168
          %1071 = vst.msk [vmem:[%s301] sm:$0xf] %vm1070, %v1006
          %1072 = vst.msk [vmem:[%s301 + $0x4] sm:$0xf] %vm1070, %v1007
          %1073 = vst.msk [vmem:[%s301 + $0x8] sm:$0xf] %vm1070, %v1008
          %1074 = vst.msk [vmem:[%s301 + $0xc] sm:$0xf] %vm1070, %v1009
          %1075 = vst.msk [vmem:[%s301 + $0x10] sm:$0xf] %vm1070, %v1010
          %1076 = vst.msk [vmem:[%s301 + $0x14] sm:$0xf] %vm1070, %v1011
          %1077 = vst.msk [vmem:[%s301 + $0x18] sm:$0xf] %vm1070, %v1012
          %1078 = vst.msk [vmem:[%s301 + $0x1c] sm:$0xf] %vm1070, %v1013
          %1079 = vst.msk [vmem:[%s301 + $0x20] sm:$0xf] %vm1070, %v1014
          %1080 = vst.msk [vmem:[%s301 + $0x24] sm:$0xf] %vm1070, %v1015
          %1081 = vst.msk [vmem:[%s301 + $0x28] sm:$0xf] %vm1070, %v1016
          %1082 = vst.msk [vmem:[%s301 + $0x2c] sm:$0xf] %vm1070, %v1017
          %1083 = vst.msk [vmem:[%s301 + $0x30] sm:$0xf] %vm1070, %v1018
          %1084 = vst.msk [vmem:[%s301 + $0x34] sm:$0xf] %vm1070, %v1019
          %1085 = vst.msk [vmem:[%s301 + $0x38] sm:$0xf] %vm1070, %v1020
          %1086 = vst.msk [vmem:[%s301 + $0x3c] sm:$0xf] %vm1070, %v1021
          %1087 = vst.msk [vmem:[%s301 + $0x40] sm:$0xf] %vm1070, %v1022
          %1088 = vst.msk [vmem:[%s301 + $0x44] sm:$0xf] %vm1070, %v1023
          %1089 = vst.msk [vmem:[%s301 + $0x48] sm:$0xf] %vm1070, %v1024
          %1090 = vst.msk [vmem:[%s301 + $0x4c] sm:$0xf] %vm1070, %v1025
          %1091 = vst.msk [vmem:[%s301 + $0x50] sm:$0xf] %vm1070, %v1026
          %1092 = vst.msk [vmem:[%s301 + $0x54] sm:$0xf] %vm1070, %v1027
          %1093 = vst.msk [vmem:[%s301 + $0x58] sm:$0xf] %vm1070, %v1028
          %1094 = vst.msk [vmem:[%s301 + $0x5c] sm:$0xf] %vm1070, %v1029
          %1095 = vst.msk [vmem:[%s301 + $0x60] sm:$0xf] %vm1070, %v1030
          %1096 = vst.msk [vmem:[%s301 + $0x64] sm:$0xf] %vm1070, %v1031
          %1097 = vst.msk [vmem:[%s301 + $0x68] sm:$0xf] %vm1070, %v1032
          %1098 = vst.msk [vmem:[%s301 + $0x6c] sm:$0xf] %vm1070, %v1033
          %1099 = vst.msk [vmem:[%s301 + $0x70] sm:$0xf] %vm1070, %v1034
          %1100 = vst.msk [vmem:[%s301 + $0x74] sm:$0xf] %vm1070, %v1035
          %1101 = vst.msk [vmem:[%s301 + $0x78] sm:$0xf] %vm1070, %v1036
          %1102 = vst.msk [vmem:[%s301 + $0x7c] sm:$0xf] %vm1070, %v1037
          %v1103 = vsel %vm874, %v910, 0.0
          %v1104 = vsel %vm874, %v911, 0.0
          %v1105 = vadd.f32 %v1103, %v1104
          %v1106 = vsel %vm874, %v912, 0.0
          %v1107 = vadd.f32 %v1105, %v1106
          %v1108 = vsel %vm874, %v913, 0.0
          %v1109 = vadd.f32 %v1107, %v1108
          %v1110 = vsel %vm874, %v914, 0.0
          %v1111 = vadd.f32 %v1109, %v1110
          %v1112 = vsel %vm874, %v915, 0.0
          %v1113 = vadd.f32 %v1111, %v1112
          %v1114 = vsel %vm874, %v916, 0.0
          %v1115 = vadd.f32 %v1113, %v1114
          %v1116 = vsel %vm874, %v917, 0.0
          %v1117 = vadd.f32 %v1115, %v1116
          %v1118 = vsel %vm874, %v918, 0.0
          %v1119 = vadd.f32 %v1117, %v1118
          %v1120 = vsel %vm874, %v919, 0.0
          %v1121 = vadd.f32 %v1119, %v1120
          %v1122 = vsel %vm874, %v920, 0.0
          %v1123 = vadd.f32 %v1121, %v1122
          %v1124 = vsel %vm874, %v921, 0.0
          %v1125 = vadd.f32 %v1123, %v1124
          %v1126 = vsel %vm874, %v922, 0.0
          %v1127 = vadd.f32 %v1125, %v1126
          %v1128 = vsel %vm874, %v923, 0.0
          %v1129 = vadd.f32 %v1127, %v1128
          %v1130 = vsel %vm874, %v924, 0.0
          %v1131 = vadd.f32 %v1129, %v1130
          %v1132 = vsel %vm874, %v925, 0.0
          %v1133 = vadd.f32 %v1131, %v1132
          %v1134 = vsel %vm874, %v926, 0.0
          %v1135 = vadd.f32 %v1133, %v1134
          %v1136 = vsel %vm874, %v927, 0.0
          %v1137 = vadd.f32 %v1135, %v1136
          %v1138 = vsel %vm874, %v928, 0.0
          %v1139 = vadd.f32 %v1137, %v1138
          %v1140 = vsel %vm874, %v929, 0.0
          %v1141 = vadd.f32 %v1139, %v1140
          %v1142 = vsel %vm874, %v930, 0.0
          %v1143 = vadd.f32 %v1141, %v1142
          %v1144 = vsel %vm874, %v931, 0.0
          %v1145 = vadd.f32 %v1143, %v1144
          %v1146 = vsel %vm874, %v932, 0.0
          %v1147 = vadd.f32 %v1145, %v1146
          %v1148 = vsel %vm874, %v933, 0.0
          %v1149 = vadd.f32 %v1147, %v1148
          %v1150 = vsel %vm874, %v934, 0.0
          %v1151 = vadd.f32 %v1149, %v1150
          %v1152 = vsel %vm874, %v935, 0.0
          %v1153 = vadd.f32 %v1151, %v1152
          %v1154 = vsel %vm874, %v936, 0.0
          %v1155 = vadd.f32 %v1153, %v1154
          %v1156 = vsel %vm874, %v937, 0.0
          %v1157 = vadd.f32 %v1155, %v1156
          %v1158 = vsel %vm874, %v938, 0.0
          %v1159 = vadd.f32 %v1157, %v1158
          %v1160 = vsel %vm874, %v939, 0.0
          %v1161 = vadd.f32 %v1159, %v1160
          %v1162 = vsel %vm874, %v940, 0.0
          %v1163 = vadd.f32 %v1161, %v1162
          %v1164 = vsel %vm874, %v941, 0.0
          %v1165 = vadd.f32 %v1163, %v1164
          %v1166 = vrot.slane %v1165, 4
          %v1167 = vadd.f32 %v1165, %v1166
          %v1168 = vrot.slane %v1167, 2
          %v1169 = vadd.f32 %v1167, %v1168
          %v1170 = vrot.slane %v1169, 1
          %v1171 = vadd.f32 %v1169, %v1170
          %v1172 = vmul.f32 %v910, %v910
          %v1173 = vmul.f32 %v911, %v911
          %v1174 = vmul.f32 %v912, %v912
          %v1175 = vmul.f32 %v913, %v913
          %v1176 = vmul.f32 %v914, %v914
          %v1177 = vmul.f32 %v915, %v915
          %v1178 = vmul.f32 %v916, %v916
          %v1179 = vmul.f32 %v917, %v917
          %v1180 = vmul.f32 %v918, %v918
          %v1181 = vmul.f32 %v919, %v919
          %v1182 = vmul.f32 %v920, %v920
          %v1183 = vmul.f32 %v921, %v921
          %v1184 = vmul.f32 %v922, %v922
          %v1185 = vmul.f32 %v923, %v923
          %v1186 = vmul.f32 %v924, %v924
          %v1187 = vmul.f32 %v925, %v925
          %v1188 = vmul.f32 %v926, %v926
          %v1189 = vmul.f32 %v927, %v927
          %v1190 = vmul.f32 %v928, %v928
          %v1191 = vmul.f32 %v929, %v929
          %v1192 = vmul.f32 %v930, %v930
          %v1193 = vmul.f32 %v931, %v931
          %v1194 = vmul.f32 %v932, %v932
          %v1195 = vmul.f32 %v933, %v933
          %v1196 = vmul.f32 %v934, %v934
          %v1197 = vmul.f32 %v935, %v935
          %v1198 = vmul.f32 %v936, %v936
          %v1199 = vmul.f32 %v937, %v937
          %v1200 = vmul.f32 %v938, %v938
          %v1201 = vmul.f32 %v939, %v939
          %v1202 = vmul.f32 %v940, %v940
          %v1203 = vmul.f32 %v941, %v941
          %v1204 = vsel %vm874, %v1172, 0.0
          %v1205 = vsel %vm874, %v1173, 0.0
          %v1206 = vadd.f32 %v1204, %v1205
          %v1207 = vsel %vm874, %v1174, 0.0
          %v1208 = vadd.f32 %v1206, %v1207
          %v1209 = vsel %vm874, %v1175, 0.0
          %v1210 = vadd.f32 %v1208, %v1209
          %v1211 = vsel %vm874, %v1176, 0.0
          %v1212 = vadd.f32 %v1210, %v1211
          %v1213 = vsel %vm874, %v1177, 0.0
          %v1214 = vadd.f32 %v1212, %v1213
          %v1215 = vsel %vm874, %v1178, 0.0
          %v1216 = vadd.f32 %v1214, %v1215
          %v1217 = vsel %vm874, %v1179, 0.0
          %v1218 = vadd.f32 %v1216, %v1217
          %v1219 = vsel %vm874, %v1180, 0.0
          %v1220 = vadd.f32 %v1218, %v1219
          %v1221 = vsel %vm874, %v1181, 0.0
          %v1222 = vadd.f32 %v1220, %v1221
          %v1223 = vsel %vm874, %v1182, 0.0
          %v1224 = vadd.f32 %v1222, %v1223
          %v1225 = vsel %vm874, %v1183, 0.0
          %v1226 = vadd.f32 %v1224, %v1225
          %v1227 = vsel %vm874, %v1184, 0.0
          %v1228 = vadd.f32 %v1226, %v1227
          %v1229 = vsel %vm874, %v1185, 0.0
          %v1230 = vadd.f32 %v1228, %v1229
          %v1231 = vsel %vm874, %v1186, 0.0
          %v1232 = vadd.f32 %v1230, %v1231
          %v1233 = vsel %vm874, %v1187, 0.0
          %v1234 = vadd.f32 %v1232, %v1233
          %v1235 = vsel %vm874, %v1188, 0.0
          %v1236 = vadd.f32 %v1234, %v1235
          %v1237 = vsel %vm874, %v1189, 0.0
          %v1238 = vadd.f32 %v1236, %v1237
          %v1239 = vsel %vm874, %v1190, 0.0
          %v1240 = vadd.f32 %v1238, %v1239
          %v1241 = vsel %vm874, %v1191, 0.0
          %v1242 = vadd.f32 %v1240, %v1241
          %v1243 = vsel %vm874, %v1192, 0.0
          %v1244 = vadd.f32 %v1242, %v1243
          %v1245 = vsel %vm874, %v1193, 0.0
          %v1246 = vadd.f32 %v1244, %v1245
          %v1247 = vsel %vm874, %v1194, 0.0
          %v1248 = vadd.f32 %v1246, %v1247
          %v1249 = vsel %vm874, %v1195, 0.0
          %v1250 = vadd.f32 %v1248, %v1249
          %v1251 = vsel %vm874, %v1196, 0.0
          %v1252 = vadd.f32 %v1250, %v1251
          %v1253 = vsel %vm874, %v1197, 0.0
          %v1254 = vadd.f32 %v1252, %v1253
          %v1255 = vsel %vm874, %v1198, 0.0
          %v1256 = vadd.f32 %v1254, %v1255
          %v1257 = vsel %vm874, %v1199, 0.0
          %v1258 = vadd.f32 %v1256, %v1257
          %v1259 = vsel %vm874, %v1200, 0.0
          %v1260 = vadd.f32 %v1258, %v1259
          %v1261 = vsel %vm874, %v1201, 0.0
          %v1262 = vadd.f32 %v1260, %v1261
          %v1263 = vsel %vm874, %v1202, 0.0
          %v1264 = vadd.f32 %v1262, %v1263
          %v1265 = vsel %vm874, %v1203, 0.0
          %v1266 = vadd.f32 %v1264, %v1265
          %v1267 = vrot.slane %v1266, 4
          %v1268 = vadd.f32 %v1266, %v1267
          %v1269 = vrot.slane %v1268, 2
          %v1270 = vadd.f32 %v1268, %v1269
          %v1271 = vrot.slane %v1270, 1
          %v1272 = vadd.f32 %v1270, %v1271
          %vm1273 = vcmask 516096
          %1274 = vst.msk [vmem:[%s266] sm:$0x1] %vm1273, %v1171
          %1275 = vst.msk [vmem:[%s272] sm:$0x1] %vm1273, %v1272
        $region36: #{tpu_custom_call.1} parent=27 // pred_fallthru
          _
        %s1276 = smul.u32 32, %s27
        %p1277 = scmp.lt.s32.totalorder %s1276, 255
        %s1278 = scalar_select %p1277, %s1276, 255
        %p1279 = scmp.lt.s32.totalorder %s28, 0
        %s1280 = scalar_select %p1279, %s28, 0
        %s1281 = sadd.s32 %s1280, %s1278
        %s1282 = smul.addr %s1281, 4
        %s1283 = scalar_lea.vmem %s2, %s1282
        %s1284 = sand.u32 %s135, 1
        %s1285 = scalar_lea.sflag [#allocation4], %s1284
        %s1286 = sand.u32 %s135, 1
        %s1287 = scalar_lea.vmem [#allocation3], %s1286
        %s1288 = sand.u32 %s163, 1
        %s1289 = scalar_lea.sflag [#allocation6], %s1288
        %s1290 = sand.u32 %s163, 1
        %s1291 = scalar_lea.vmem [#allocation5], %s1290
        // Predicated region
        $region37: #{tpu_custom_call.1} parent=27 // pred_check
          %p1292 = pneg %p117
        $region38: #{tpu_custom_call.1} parent=27 // pred_check_branch
          %1294 = sbr.rel (%p1292) target = $region40
        $region39: #{tpu_custom_call.1} parent=27 // pred_region
          %s1295 = smul.u32 32, %s27
        $region40: #{tpu_custom_call.1} parent=27 // pred_fallthru
          _
        // Predicated region
        $region41: #{tpu_custom_call.1} parent=27 // pred_check
          %p1296 = pneg %p145
        $region42: #{tpu_custom_call.1} parent=27 // pred_check_branch
          %1298 = sbr.rel (%p1296) target = $region44
        $region43: #{tpu_custom_call.1} parent=27 // pred_region
          %s1300 = ssub.s32 16, 16
          %1301 = vsyncadd %s1285, %s1300
          %s1302 = sadd.s32 %s28, %s27
          %s1303 = smul.addr %s1302, 16
          %s1304 = scalar_lea.hbm %s3, %s1303
          %s1306 = sshll.u32 %s1287, 4
          %s1307 = int_to_ptr.vmem [resolvable:$true] %s1306
          %1309 = dma.vmem_to_hbm [thread:$0]  %s1307, 16, %s1304, %s1285
        $region44: #{tpu_custom_call.1} parent=27 // pred_fallthru
          _
        // Predicated region
        $region45: #{tpu_custom_call.1} parent=27 // pred_check
          %p1310 = pneg %p173
        $region46: #{tpu_custom_call.1} parent=27 // pred_check_branch
          %1312 = sbr.rel (%p1310) target = $region48
        $region47: #{tpu_custom_call.1} parent=27 // pred_region
          %s1314 = ssub.s32 16, 16
          %1315 = vsyncadd %s1289, %s1314
          %s1316 = sadd.s32 %s28, %s27
          %s1317 = smul.addr %s1316, 16
          %s1318 = scalar_lea.hbm %s4, %s1317
          %s1320 = sshll.u32 %s1291, 4
          %s1321 = int_to_ptr.vmem [resolvable:$true] %s1320
          %1323 = dma.vmem_to_hbm [thread:$0]  %s1321, 16, %s1318, %s1289
        $region48: #{tpu_custom_call.1} parent=27 // pred_fallthru
          _
      $region28: #{tpu_custom_call.1} parent=5 // pred_fallthru
        _
      %p1324 = scmp.le.s32.totalorder 2, %s17
      // Predicated region
      $region49: #{tpu_custom_call.1} parent=5 // pred_check
        %p1325 = pneg %p1324
      $region50: #{tpu_custom_call.1} parent=5 // pred_check_branch
        %1327 = sbr.rel (%p1325) target = $region52
      $region51: #{tpu_custom_call.1} parent=5 // pred_region
        %s1328 = ssub.s32 %s17, 2
        // Predicated region
        $region53: #{tpu_custom_call.1} parent=51 // pred_check
          %p1329 = pneg %p123
        $region54: #{tpu_custom_call.1} parent=51 // pred_check_branch
          %1331 = sbr.rel (%p1329) target = $region56
        $region55: #{tpu_custom_call.1} parent=51 // pred_region
          %s1332 = smul.u32 32, %s30
          %p1333 = scmp.lt.s32.totalorder %s1332, 255
          %s1334 = scalar_select %p1333, %s1332, 255
          %p1335 = scmp.lt.s32.totalorder %s31, 0
          %s1336 = scalar_select %p1335, %s31, 0
          %s1337 = sadd.s32 %s1336, %s1334
          %s1338 = smul.addr %s1337, 4
          %s1339 = scalar_lea.vmem %s2, %s1338
        $region56: #{tpu_custom_call.1} parent=51 // pred_fallthru
          _
        // Predicated region
        $region57: #{tpu_custom_call.1} parent=51 // pred_check
          %p1340 = pneg %p151
        $region58: #{tpu_custom_call.1} parent=51 // pred_check_branch
          %1342 = sbr.rel (%p1340) target = $region60
        $region59: #{tpu_custom_call.1} parent=51 // pred_region
          %s1343 = sand.u32 %s136, 1
          %s1344 = scalar_lea.sflag [#allocation4], %s1343
          %s1345 = sand.u32 %s136, 1
          %s1346 = scalar_lea.vmem [#allocation3], %s1345
          %1347 = dma.done %s1344, 16
        $region60: #{tpu_custom_call.1} parent=51 // pred_fallthru
          _
        // Predicated region
        $region61: #{tpu_custom_call.1} parent=51 // pred_check
          %p1348 = pneg %p179
        $region62: #{tpu_custom_call.1} parent=51 // pred_check_branch
          %1350 = sbr.rel (%p1348) target = $region64
        $region63: #{tpu_custom_call.1} parent=51 // pred_region
          %s1351 = sand.u32 %s164, 1
          %s1352 = scalar_lea.sflag [#allocation6], %s1351
          %s1353 = sand.u32 %s164, 1
          %s1354 = scalar_lea.vmem [#allocation5], %s1353
          %1355 = dma.done %s1352, 16
        $region64: #{tpu_custom_call.1} parent=51 // pred_fallthru
          _
      $region52: #{tpu_custom_call.1} parent=5 // pred_fallthru
        _
    $region6: #{tpu_custom_call.1} parent=1 // loop_footer
      %s21 = sadd.s32 1, %s17
    $region7: #{tpu_custom_call.1} parent=1 // loop_footer_branch
      %16 = sbr.rel target = $region3
    $region8: #{tpu_custom_call.1} parent=1 // loop_exit
      _
    %1356 = vsyncpa [#allocation4], 1
    %s1357 = scalar_lea.sflag [#allocation4], 1
    %1358 = vsyncpa %s1357, 1
    %1359 = vsyncpa [#allocation6], 1
    %s1360 = scalar_lea.sflag [#allocation6], 1
    %1361 = vsyncpa %s1360, 1

</llo_original>
